<compile_context>
chip_gen: v5e
topology: v5e:2x2
jax: 0.10.0
libtpu: 0.0.40
codegen_flags: <defaults>
</compile_context>

<pallas_src>
import functools

import jax
import jax.numpy as jnp
from jax import lax
from jax.experimental import pallas as pl
from jax.experimental.pallas import tpu as pltpu


_LN_EPS = 1e-5
_INV_SQRT2 = 0.7071067811865476
_SQRT_2_OVER_PI = 0.7978845608028654
# False -> tanh GELU (EUP, fast).  True -> PyTorch nn.GELU() exact erf (VALU).
_GELU_EXACT = False


def _gelu(x):
    if _GELU_EXACT:
        return 0.5 * x * (1.0 + lax.erf(x * _INV_SQRT2))
    inner = _SQRT_2_OVER_PI * (x + 0.044715 * (x * x * x))
    return 0.5 * x * (1.0 + jnp.tanh(inner))


def _layernorm(x, g, b):
    # One-pass statistics: E[x], E[x^2] -> the two lane-reduces are independent.
    mu = jnp.mean(x, axis=-1, keepdims=True)
    ms = jnp.mean(x * x, axis=-1, keepdims=True)
    var = ms - mu * mu
    return (x - mu) * lax.rsqrt(var + _LN_EPS) * g + b


# ------------------------------ fused kernel ------------------------------

def fused_mixer_kernel(p_ref, emb_w_ref, emb_b_ref,
                       ln_g_ref, ln_b_ref,
                       tm_w1_ref, tm_b1_ref, tm_w2_ref, tm_b2_ref,
                       cm_ln_g_ref, cm_ln_b_ref,
                       cm_w1_ref, cm_b1_ref, cm_w2_ref, cm_b2_ref,
                       hg_ref, hb_ref, fc_w_ref, fc_b_ref,
                       o_ref, x_ref):
    bt, p, _ = p_ref.shape              # images per tile, patches per image
    d_model = ln_g_ref.shape[-1]        # hidden dim
    d_idx = pl.program_id(1)
    n_layers = pl.num_programs(1)

    # ---- patch embedding: only on the first depth step of this batch tile ----
    @pl.when(d_idx == 0)
    def _():
        pat = jnp.concatenate([p_ref[b] for b in range(bt)], axis=0)   # (BT*P, K) bf16
        x_ref[...] = (jnp.dot(pat, emb_w_ref[...],
                              preferred_element_type=jnp.float32)
                      + emb_b_ref[...])                                # (BT*P, D) f32

    x = x_ref[...]                                                     # (BT*P, D)

    # ---- one mixer layer (this step's weights were streamed into VMEM) ----
    # Reference: x = LN(x); x = x + token_mix(x.T).T; x = x + channel_mix(x)
    y = _layernorm(x, ln_g_ref[...], ln_b_ref[...])                    # (BT*P, D)

    # token mixing in (P, BT*D) layout: images concatenated along lanes.
    y_t = jnp.concatenate([y[b * p:(b + 1) * p, :] for b in range(bt)],
                          axis=1).astype(jnp.bfloat16)                 # (P, BT*D)
    h = (jnp.dot(tm_w1_ref[...], y_t,
                 preferred_element_type=jnp.float32)
         + tm_b1_ref[...])                                             # (T, BT*D)
    h = _gelu(h).astype(jnp.bfloat16)
    t = (jnp.dot(tm_w2_ref[...], h,
                 preferred_element_type=jnp.float32)
         + tm_b2_ref[...])                                             # (P, BT*D)
    tmix = jnp.concatenate(
        [t[:, b * d_model:(b + 1) * d_model] for b in range(bt)],
        axis=0)                                                        # (BT*P, D)
    x = y + tmix                                                       # residual on LN(x) (matches spec)

    # channel mixing on the merged (BT*P, D) layout.
    z = _layernorm(x, cm_ln_g_ref[...], cm_ln_b_ref[...])
    h2 = (jnp.dot(z.astype(jnp.bfloat16), cm_w1_ref[...],
                  preferred_element_type=jnp.float32)
          + cm_b1_ref[...])                                            # (BT*P, Cm)
    h2 = _gelu(h2).astype(jnp.bfloat16)
    h2 = (jnp.dot(h2, cm_w2_ref[...],
                  preferred_element_type=jnp.float32)
          + cm_b2_ref[...])                                            # (BT*P, D)
    x = x + h2
    x_ref[...] = x

    # ---- head: only on the last depth step (LN -> mean pool -> linear) ----
    @pl.when(d_idx == n_layers - 1)
    def _():
        yh = _layernorm(x, hg_ref[...], hb_ref[...])                   # (BT*P, D)
        pooled = jnp.concatenate(
            [jnp.mean(yh[b * p:(b + 1) * p, :], axis=0, keepdims=True)
             for b in range(bt)], axis=0)                              # (BT, D)
        o_ref[...] = (jnp.dot(pooled.astype(jnp.bfloat16), fc_w_ref[...],
                              preferred_element_type=jnp.float32)
                      + fc_b_ref[...])                                 # (BT, NCp)


# ------------------------------ pallas_call wrapper ------------------------------

def fused_mixer(patches, pk, b_tile):
    B, P, K = patches.shape
    assert B % b_tile == 0
    nb = B // b_tile
    D = pk["emb_w"].shape[1]
    depth = pk["ln_g"].shape[0]
    T = pk["tm_w1"].shape[1]
    Cm = pk["cm_w1"].shape[2]
    NCp = pk["fc_w"].shape[1]

    operands = (patches,
                pk["emb_w"], pk["emb_b"],
                pk["ln_g"], pk["ln_b"],
                pk["tm_w1"], pk["tm_b1"], pk["tm_w2"], pk["tm_b2"],
                pk["cm_ln_g"], pk["cm_ln_b"],
                pk["cm_w1"], pk["cm_b1"], pk["cm_w2"], pk["cm_b2"],
                pk["head_g"], pk["head_b"], pk["fc_w"], pk["fc_b"])

    def const_spec(a):
        zeros = (0,) * a.ndim
        return pl.BlockSpec(a.shape, lambda b, d, _z=zeros: _z)

    def layer_spec(a):
        # Stacked (depth, ...) weights: stream one layer per depth step.
        tail = (0,) * (a.ndim - 1)
        return pl.BlockSpec((None,) + a.shape[1:],
                            lambda b, d, _z=tail: (d,) + _z)

    in_specs = [pl.BlockSpec((b_tile, P, K), lambda b, d: (b, 0, 0))]
    in_specs += [const_spec(operands[1]), const_spec(operands[2])]
    in_specs += [layer_spec(op) for op in operands[3:15]]
    in_specs += [const_spec(op) for op in operands[15:]]

    def nbytes(a):
        return int(a.size) * a.dtype.itemsize

    # Explicit scoped-VMEM budget: constants + one layer's weights + patch tile
    # + output tile (each double-buffered by the pipeline) + activation scratch.
    per_layer_bytes = sum(nbytes(op) // depth for op in operands[3:15])
    const_bytes = sum(nbytes(op) for op in operands[1:3] + operands[15:])
    patch_block_bytes = b_tile * P * K * patches.dtype.itemsize
    out_block_bytes = b_tile * NCp * 4
    scratch_bytes = b_tile * P * D * 4
    resident = 2 * (per_layer_bytes + const_bytes
                    + patch_block_bytes + out_block_bytes) + scratch_bytes
    vmem_limit = int(min(64 << 20, max(2 << 20, 2 * resident)))

    flops = B * (2 * P * K * D
                 + depth * (4 * P * T * D + 4 * P * D * Cm)
                 + 2 * D * NCp)
    transcendentals = B * depth * (T * D + P * Cm)
    bytes_accessed = int(sum(nbytes(op) for op in operands) + B * NCp * 4)

    out = pl.pallas_call(
        fused_mixer_kernel,
        out_shape=jax.ShapeDtypeStruct((nb, b_tile, NCp), jnp.float32),
        grid=(nb, depth),
        in_specs=in_specs,
        out_specs=pl.BlockSpec((None, b_tile, NCp), lambda b, d: (b, 0, 0)),
        scratch_shapes=[pltpu.VMEM((b_tile * P, D), jnp.float32)],
        compiler_params=pltpu.CompilerParams(
            dimension_semantics=("parallel", "arbitrary"),
            vmem_limit_bytes=vmem_limit),
        cost_estimate=pl.CostEstimate(
            flops=int(flops),
            transcendentals=int(transcendentals),
            bytes_accessed=bytes_accessed),
    )(*operands)
    return out.reshape(B, NCp)


# ------------------------------ glue (plain JAX) ------------------------------

def extract_patches(x, patch_size):
    # NCHW -> (B, P, C*ps*ps), per-patch element order (c, ki, kj) to match
    # Conv2d(kernel=stride=patch_size) + flatten(2).transpose(1, 2).
    B, C, H, W = x.shape
    ph, pw = H // patch_size, W // patch_size
    x = x.reshape(B, C, ph, patch_size, pw, patch_size)
    x = x.transpose(0, 2, 4, 1, 3, 5)                 # (B, ph, pw, C, ps, ps)
    return x.reshape(B, ph * pw, C * patch_size * patch_size)


def init_params(key, *, in_channels, patch_size, patch_num, hidden_dim,
                token_dim, channel_dim, num_classes, depth):
    K = in_channels * patch_size * patch_size

    def lin(k, fan_in, fan_out):
        k1, k2 = jax.random.split(k)
        bound = 1.0 / float(fan_in) ** 0.5
        w = jax.random.uniform(k1, (fan_in, fan_out), jnp.float32, -bound, bound)
        b = jax.random.uniform(k2, (1, fan_out), jnp.float32, -bound, bound)
        return w, b

    keys = jax.random.split(key, depth + 2)
    emb_w, emb_b = lin(keys[0], K, hidden_dim)

    layers = []
    for d in range(depth):
        lk = jax.random.split(keys[1 + d], 4)
        tm_w1, tm_b1 = lin(lk[0], patch_num, token_dim)
        tm_w2, tm_b2 = lin(lk[1], token_dim, patch_num)
        cm_w1, cm_b1 = lin(lk[2], hidden_dim, channel_dim)
        cm_w2, cm_b2 = lin(lk[3], channel_dim, hidden_dim)
        layers.append(dict(
            ln_g=jnp.ones((1, hidden_dim), jnp.float32),
            ln_b=jnp.zeros((1, hidden_dim), jnp.float32),
            tm_w1=tm_w1, tm_b1=tm_b1, tm_w2=tm_w2, tm_b2=tm_b2,
            cm_ln_g=jnp.ones((1, hidden_dim), jnp.float32),
            cm_ln_b=jnp.zeros((1, hidden_dim), jnp.float32),
            cm_w1=cm_w1, cm_b1=cm_b1, cm_w2=cm_w2, cm_b2=cm_b2,
        ))

    fc_w, fc_b = lin(keys[-1], hidden_dim, num_classes)
    return dict(
        emb_w=emb_w, emb_b=emb_b,
        layers=layers,
        ln_g=jnp.ones((1, hidden_dim), jnp.float32),
        ln_b=jnp.zeros((1, hidden_dim), jnp.float32),
        fc_w=fc_w, fc_b=fc_b,
    )


def pack_params(params, num_classes):
    """Stack per-layer weights on a depth axis (for layer streaming), cast
    matmul weights to bf16, pre-transpose token-mixing weights/biases so the
    kernel does plain (M,K)@(K,N) dots, lane-pad the classifier to 128."""
    layers = params["layers"]

    def stack(name):
        return jnp.stack([lp[name] for lp in layers], axis=0)

    def bf16(a):
        return a.astype(jnp.bfloat16)

    D, nc = params["fc_w"].shape
    nc_pad = ((nc + 127) // 128) * 128
    fc_w = jnp.zeros((D, nc_pad), jnp.float32).at[:, :nc].set(params["fc_w"])
    fc_b = jnp.zeros((1, nc_pad), jnp.float32).at[:, :nc].set(params["fc_b"])

    return dict(
        emb_w=bf16(params["emb_w"]), emb_b=params["emb_b"],
        ln_g=stack("ln_g"), ln_b=stack("ln_b"),
        # Pre-transposed token-mixing weights: (depth, T, P) / (depth, P, T)
        tm_w1=bf16(jnp.transpose(stack("tm_w1"), (0, 2, 1))),
        tm_b1=jnp.transpose(stack("tm_b1"), (0, 2, 1)),   # (depth, T, 1) column
        tm_w2=bf16(jnp.transpose(stack("tm_w2"), (0, 2, 1))),
        tm_b2=jnp.transpose(stack("tm_b2"), (0, 2, 1)),   # (depth, P, 1) column
        cm_ln_g=stack("cm_ln_g"), cm_ln_b=stack("cm_ln_b"),
        cm_w1=bf16(stack("cm_w1")), cm_b1=stack("cm_b1"),
        cm_w2=bf16(stack("cm_w2")), cm_b2=stack("cm_b2"),
        head_g=params["ln_g"], head_b=params["ln_b"],
        fc_w=bf16(fc_w), fc_b=fc_b,
    )


def _pick_batch_tile(B, P):
    # Aim for B_TILE*P >= 128 MXU rows while dividing the batch evenly.
    bt = max(1, min(B, max(1, 128 // P)))
    while B % bt:
        bt -= 1
    return bt


@functools.partial(jax.jit, static_argnames=("patch_size", "num_classes"))
def mlp_mixer_forward(x, packed, patch_size, num_classes):
    # Patches are cast to bf16 on the host side of the kernel (halves the DMA).
    patches = extract_patches(x, patch_size).astype(jnp.bfloat16)   # (B, P, K)
    B, P, _ = patches.shape
    b_tile = _pick_batch_tile(B, P)
    logits_padded = fused_mixer(patches, packed, b_tile)            # (B, 128)
    return logits_padded[:, :num_classes]                           # (B, num_classes)


# ------------------------------ main ------------------------------

if __name__ == "__main__":
    B, C, H, W = 2, 4, 16, 16
    patch_size = 4
    hidden_dim = 32
    token_mixing_dim = 16
    channel_mixing_dim = 64
    num_classes = 10
    depth = 2
    patch_num = (H // patch_size) * (W // patch_size)    # 16

    key = jax.random.PRNGKey(0)
    kx, kp = jax.random.split(key)
    x = jax.random.normal(kx, (B, C, H, W), jnp.float32)

    params = init_params(
        kp, in_channels=C, patch_size=patch_size, patch_num=patch_num,
        hidden_dim=hidden_dim, token_dim=token_mixing_dim,
        channel_dim=channel_mixing_dim, num_classes=num_classes, depth=depth)
    packed = pack_params(params, num_classes)

    out = mlp_mixer_forward(x, packed, patch_size=patch_size,
                            num_classes=num_classes)
    jax.block_until_ready(out)
    assert out.shape == (B, num_classes), out.shape
    print("KERNEL_OK")
</pallas_src>

<mosaic_0001>
module attributes {stable_mosaic.version = 11 : i64} {
  func.func @fused_mixer_kernel(%arg0: i32, %arg1: i32, %arg2: memref<2x16x64xbf16, #tpu.memory_space<vmem>>, %arg3: memref<64x32xbf16, #tpu.memory_space<vmem>>, %arg4: memref<1x32xf32, #tpu.memory_space<vmem>>, %arg5: memref<1x1x32xf32, #tpu.memory_space<vmem>>, %arg6: memref<1x1x32xf32, #tpu.memory_space<vmem>>, %arg7: memref<1x16x16xbf16, #tpu.memory_space<vmem>>, %arg8: memref<1x16x1xf32, #tpu.memory_space<vmem>>, %arg9: memref<1x16x16xbf16, #tpu.memory_space<vmem>>, %arg10: memref<1x16x1xf32, #tpu.memory_space<vmem>>, %arg11: memref<1x1x32xf32, #tpu.memory_space<vmem>>, %arg12: memref<1x1x32xf32, #tpu.memory_space<vmem>>, %arg13: memref<1x32x64xbf16, #tpu.memory_space<vmem>>, %arg14: memref<1x1x64xf32, #tpu.memory_space<vmem>>, %arg15: memref<1x64x32xbf16, #tpu.memory_space<vmem>>, %arg16: memref<1x1x32xf32, #tpu.memory_space<vmem>>, %arg17: memref<1x32xf32, #tpu.memory_space<vmem>>, %arg18: memref<1x32xf32, #tpu.memory_space<vmem>>, %arg19: memref<32x128xbf16, #tpu.memory_space<vmem>>, %arg20: memref<1x128xf32, #tpu.memory_space<vmem>>, %arg21: memref<1x2x128xf32, #tpu.memory_space<vmem>>, %arg22: memref<32x32xf32, #tpu.memory_space<vmem>>) attributes {dimension_semantics = [#tpu.dimension_semantics<parallel>, #tpu.dimension_semantics<arbitrary>], iteration_bounds = array<i64: 1, 2>, scalar_prefetch = 0 : i64, scratch_operands = 1 : i64, tpu.core_type = #tpu.core_type<tc>, window_params = [{transform_indices = @transform_0, window_bounds = array<i64: 2, 16, 64>}, {pipeline_mode = #tpu.pipeline_mode<synchronous>, transform_indices = @transform_1, window_bounds = array<i64: 64, 32>}, {pipeline_mode = #tpu.pipeline_mode<synchronous>, transform_indices = @transform_2, window_bounds = array<i64: 1, 32>}, {transform_indices = @transform_3, window_bounds = array<i64: 1, 1, 32>}, {transform_indices = @transform_4, window_bounds = array<i64: 1, 1, 32>}, {transform_indices = @transform_5, window_bounds = array<i64: 1, 16, 16>}, {transform_indices = @transform_6, window_bounds = array<i64: 1, 16, 1>}, {transform_indices = @transform_7, window_bounds = array<i64: 1, 16, 16>}, {transform_indices = @transform_8, window_bounds = array<i64: 1, 16, 1>}, {transform_indices = @transform_9, window_bounds = array<i64: 1, 1, 32>}, {transform_indices = @transform_10, window_bounds = array<i64: 1, 1, 32>}, {transform_indices = @transform_11, window_bounds = array<i64: 1, 32, 64>}, {transform_indices = @transform_12, window_bounds = array<i64: 1, 1, 64>}, {transform_indices = @transform_13, window_bounds = array<i64: 1, 64, 32>}, {transform_indices = @transform_14, window_bounds = array<i64: 1, 1, 32>}, {pipeline_mode = #tpu.pipeline_mode<synchronous>, transform_indices = @transform_15, window_bounds = array<i64: 1, 32>}, {pipeline_mode = #tpu.pipeline_mode<synchronous>, transform_indices = @transform_16, window_bounds = array<i64: 1, 32>}, {pipeline_mode = #tpu.pipeline_mode<synchronous>, transform_indices = @transform_17, window_bounds = array<i64: 32, 128>}, {pipeline_mode = #tpu.pipeline_mode<synchronous>, transform_indices = @transform_18, window_bounds = array<i64: 1, 128>}, {transform_indices = @transform_19, window_bounds = array<i64: 1, 2, 128>}]} {
    %c0_i32 = arith.constant 0 : i32
    %0 = arith.cmpi eq, %arg1, %c0_i32 : i32
    %1 = arith.extui %0 : i1 to i32
    %c0_i32_0 = arith.constant 0 : i32
    %2 = arith.cmpi ne, %1, %c0_i32_0 : i32
    scf.if %2 {
      %c0_62 = arith.constant 0 : index
      %c0_63 = arith.constant 0 : index
      %c0_64 = arith.constant 0 : index
      %126 = vector.load %arg2[%c0_62, %c0_63, %c0_64] : memref<2x16x64xbf16, #tpu.memory_space<vmem>>, vector<1x16x64xbf16>
      %127 = vector.shape_cast %126 : vector<1x16x64xbf16> to vector<16x64xbf16>
      %c1 = arith.constant 1 : index
      %c0_65 = arith.constant 0 : index
      %c0_66 = arith.constant 0 : index
      %128 = vector.load %arg2[%c1, %c0_65, %c0_66] : memref<2x16x64xbf16, #tpu.memory_space<vmem>>, vector<1x16x64xbf16>
      %129 = vector.shape_cast %128 : vector<1x16x64xbf16> to vector<16x64xbf16>
      %130 = tpu.concatenate %127, %129 in 0 : vector<16x64xbf16>, vector<16x64xbf16> -> vector<32x64xbf16>
      %c0_67 = arith.constant 0 : index
      %c0_68 = arith.constant 0 : index
      %131 = vector.load %arg3[%c0_67, %c0_68] : memref<64x32xbf16, #tpu.memory_space<vmem>>, vector<64x32xbf16>
      %cst_69 = arith.constant dense<0.000000e+00> : vector<32x32xf32>
      %132 = tpu.matmul %130, %131, %cst_69 {dimension_numbers = #tpu.dot_dimension_numbers<[1], [0], [0], [1], [0, 0, 1, 1], [], []>} : vector<32x64xbf16>, vector<64x32xbf16>, vector<32x32xf32> -> vector<32x32xf32>
      %c0_70 = arith.constant 0 : index
      %c0_71 = arith.constant 0 : index
      %133 = vector.load %arg4[%c0_70, %c0_71] : memref<1x32xf32, #tpu.memory_space<vmem>>, vector<1x32xf32>
      %134 = vector.broadcast %133 : vector<1x32xf32> to vector<32x32xf32>
      %135 = arith.addf %132, %134 : vector<32x32xf32>
      %c0_72 = arith.constant 0 : index
      %c0_73 = arith.constant 0 : index
      %136 = vector.load %arg22[%c0_72, %c0_73] : memref<32x32xf32, #tpu.memory_space<vmem>>, vector<32x32xf32>
      tpu.vector_store %arg22[%c0_72, %c0_73], %135 {strides = array<i32>} : memref<32x32xf32, #tpu.memory_space<vmem>>, vector<32x32xf32>,
    } else {
    }
    %c0 = arith.constant 0 : index
    %c0_1 = arith.constant 0 : index
    %3 = vector.load %arg22[%c0, %c0_1] : memref<32x32xf32, #tpu.memory_space<vmem>>, vector<32x32xf32>
    %c0_2 = arith.constant 0 : index
    %c0_3 = arith.constant 0 : index
    %c0_4 = arith.constant 0 : index
    %4 = vector.load %arg5[%c0_2, %c0_3, %c0_4] : memref<1x1x32xf32, #tpu.memory_space<vmem>>, vector<1x1x32xf32>
    %5 = vector.shape_cast %4 : vector<1x1x32xf32> to vector<1x32xf32>
    %c0_5 = arith.constant 0 : index
    %c0_6 = arith.constant 0 : index
    %c0_7 = arith.constant 0 : index
    %6 = vector.load %arg6[%c0_5, %c0_6, %c0_7] : memref<1x1x32xf32, #tpu.memory_space<vmem>>, vector<1x1x32xf32>
    %7 = vector.shape_cast %6 : vector<1x1x32xf32> to vector<1x32xf32>
    %cst = arith.constant dense<0.000000e+00> : vector<32xf32>
    %8 = vector.multi_reduction <add>, %3, %cst [1] : vector<32x32xf32> to vector<32xf32>
    %9 = vector.shape_cast %8 : vector<32xf32> to vector<32x1xf32>
    %cst_8 = arith.constant 3.200000e+01 : f32
    %10 = vector.broadcast %cst_8 : f32 to vector<32x1xf32>
    %11 = arith.divf %9, %10 : vector<32x1xf32>
    %12 = arith.mulf %3, %3 : vector<32x32xf32>
    %cst_9 = arith.constant dense<0.000000e+00> : vector<32xf32>
    %13 = vector.multi_reduction <add>, %12, %cst_9 [1] : vector<32x32xf32> to vector<32xf32>
    %14 = vector.shape_cast %13 : vector<32xf32> to vector<32x1xf32>
    %cst_10 = arith.constant 3.200000e+01 : f32
    %15 = vector.broadcast %cst_10 : f32 to vector<32x1xf32>
    %16 = arith.divf %14, %15 : vector<32x1xf32>
    %17 = arith.mulf %11, %11 : vector<32x1xf32>
    %18 = arith.subf %16, %17 : vector<32x1xf32>
    %19 = vector.broadcast %11 : vector<32x1xf32> to vector<32x32xf32>
    %20 = arith.subf %3, %19 : vector<32x32xf32>
    %cst_11 = arith.constant 9.99999974E-6 : f32
    %21 = vector.broadcast %cst_11 : f32 to vector<32x1xf32>
    %22 = arith.addf %18, %21 : vector<32x1xf32>
    %23 = math.rsqrt %22 : vector<32x1xf32>
    %24 = vector.broadcast %23 : vector<32x1xf32> to vector<32x32xf32>
    %25 = arith.mulf %20, %24 : vector<32x32xf32>
    %26 = vector.broadcast %5 : vector<1x32xf32> to vector<32x32xf32>
    %27 = arith.mulf %25, %26 : vector<32x32xf32>
    %28 = vector.broadcast %7 : vector<1x32xf32> to vector<32x32xf32>
    %29 = arith.addf %27, %28 : vector<32x32xf32>
    %30 = vector.extract_strided_slice %29 {offsets = [0, 0], sizes = [16, 32], strides = [1, 1]} : vector<32x32xf32> to vector<16x32xf32>
    %31 = vector.extract_strided_slice %29 {offsets = [16, 0], sizes = [16, 32], strides = [1, 1]} : vector<32x32xf32> to vector<16x32xf32>
    %32 = tpu.concatenate %30, %31 in 1 : vector<16x32xf32>, vector<16x32xf32> -> vector<16x64xf32>
    %33 = arith.truncf %32 : vector<16x64xf32> to vector<16x64xbf16>
    %c0_12 = arith.constant 0 : index
    %c0_13 = arith.constant 0 : index
    %c0_14 = arith.constant 0 : index
    %34 = vector.load %arg7[%c0_12, %c0_13, %c0_14] : memref<1x16x16xbf16, #tpu.memory_space<vmem>>, vector<1x16x16xbf16>
    %35 = vector.shape_cast %34 : vector<1x16x16xbf16> to vector<16x16xbf16>
    %cst_15 = arith.constant dense<0.000000e+00> : vector<16x64xf32>
    %36 = tpu.matmul %35, %33, %cst_15 {dimension_numbers = #tpu.dot_dimension_numbers<[1], [0], [0], [1], [0, 0, 1, 1], [], []>} : vector<16x16xbf16>, vector<16x64xbf16>, vector<16x64xf32> -> vector<16x64xf32>
    %c0_16 = arith.constant 0 : index
    %c0_17 = arith.constant 0 : index
    %c0_18 = arith.constant 0 : index
    %37 = vector.load %arg8[%c0_16, %c0_17, %c0_18] : memref<1x16x1xf32, #tpu.memory_space<vmem>>, vector<1x16x1xf32>
    %38 = vector.shape_cast %37 : vector<1x16x1xf32> to vector<16x1xf32>
    %39 = vector.broadcast %38 : vector<16x1xf32> to vector<16x64xf32>
    %40 = arith.addf %36, %39 : vector<16x64xf32>
    %41 = arith.mulf %40, %40 : vector<16x64xf32>
    %42 = arith.mulf %41, %40 : vector<16x64xf32>
    %cst_19 = arith.constant 4.471500e-02 : f32
    %43 = vector.broadcast %cst_19 : f32 to vector<16x64xf32>
    %44 = arith.mulf %43, %42 : vector<16x64xf32>
    %45 = arith.addf %40, %44 : vector<16x64xf32>
    %cst_20 = arith.constant 0.797884583 : f32
    %46 = vector.broadcast %cst_20 : f32 to vector<16x64xf32>
    %47 = arith.mulf %46, %45 : vector<16x64xf32>
    %cst_21 = arith.constant 5.000000e-01 : f32
    %48 = vector.broadcast %cst_21 : f32 to vector<16x64xf32>
    %49 = arith.mulf %48, %40 : vector<16x64xf32>
    %50 = math.tanh %47 : vector<16x64xf32>
    %cst_22 = arith.constant 1.000000e+00 : f32
    %51 = vector.broadcast %cst_22 : f32 to vector<16x64xf32>
    %52 = arith.addf %51, %50 : vector<16x64xf32>
    %53 = arith.mulf %49, %52 : vector<16x64xf32>
    %54 = arith.truncf %53 : vector<16x64xf32> to vector<16x64xbf16>
    %c0_23 = arith.constant 0 : index
    %c0_24 = arith.constant 0 : index
    %c0_25 = arith.constant 0 : index
    %55 = vector.load %arg9[%c0_23, %c0_24, %c0_25] : memref<1x16x16xbf16, #tpu.memory_space<vmem>>, vector<1x16x16xbf16>
    %56 = vector.shape_cast %55 : vector<1x16x16xbf16> to vector<16x16xbf16>
    %cst_26 = arith.constant dense<0.000000e+00> : vector<16x64xf32>
    %57 = tpu.matmul %56, %54, %cst_26 {dimension_numbers = #tpu.dot_dimension_numbers<[1], [0], [0], [1], [0, 0, 1, 1], [], []>} : vector<16x16xbf16>, vector<16x64xbf16>, vector<16x64xf32> -> vector<16x64xf32>
    %c0_27 = arith.constant 0 : index
    %c0_28 = arith.constant 0 : index
    %c0_29 = arith.constant 0 : index
    %58 = vector.load %arg10[%c0_27, %c0_28, %c0_29] : memref<1x16x1xf32, #tpu.memory_space<vmem>>, vector<1x16x1xf32>
    %59 = vector.shape_cast %58 : vector<1x16x1xf32> to vector<16x1xf32>
    %60 = vector.broadcast %59 : vector<16x1xf32> to vector<16x64xf32>
    %61 = arith.addf %57, %60 : vector<16x64xf32>
    %62 = vector.extract_strided_slice %61 {offsets = [0, 0], sizes = [16, 32], strides = [1, 1]} : vector<16x64xf32> to vector<16x32xf32>
    %63 = vector.extract_strided_slice %61 {offsets = [0, 32], sizes = [16, 32], strides = [1, 1]} : vector<16x64xf32> to vector<16x32xf32>
    %64 = tpu.concatenate %62, %63 in 0 : vector<16x32xf32>, vector<16x32xf32> -> vector<32x32xf32>
    %65 = arith.addf %29, %64 : vector<32x32xf32>
    %c0_30 = arith.constant 0 : index
    %c0_31 = arith.constant 0 : index
    %c0_32 = arith.constant 0 : index
    %66 = vector.load %arg11[%c0_30, %c0_31, %c0_32] : memref<1x1x32xf32, #tpu.memory_space<vmem>>, vector<1x1x32xf32>
    %67 = vector.shape_cast %66 : vector<1x1x32xf32> to vector<1x32xf32>
    %c0_33 = arith.constant 0 : index
    %c0_34 = arith.constant 0 : index
    %c0_35 = arith.constant 0 : index
    %68 = vector.load %arg12[%c0_33, %c0_34, %c0_35] : memref<1x1x32xf32, #tpu.memory_space<vmem>>, vector<1x1x32xf32>
    %69 = vector.shape_cast %68 : vector<1x1x32xf32> to vector<1x32xf32>
    %cst_36 = arith.constant dense<0.000000e+00> : vector<32xf32>
    %70 = vector.multi_reduction <add>, %65, %cst_36 [1] : vector<32x32xf32> to vector<32xf32>
    %71 = vector.shape_cast %70 : vector<32xf32> to vector<32x1xf32>
    %cst_37 = arith.constant 3.200000e+01 : f32
    %72 = vector.broadcast %cst_37 : f32 to vector<32x1xf32>
    %73 = arith.divf %71, %72 : vector<32x1xf32>
    %74 = arith.mulf %65, %65 : vector<32x32xf32>
    %cst_38 = arith.constant dense<0.000000e+00> : vector<32xf32>
    %75 = vector.multi_reduction <add>, %74, %cst_38 [1] : vector<32x32xf32> to vector<32xf32>
    %76 = vector.shape_cast %75 : vector<32xf32> to vector<32x1xf32>
    %cst_39 = arith.constant 3.200000e+01 : f32
    %77 = vector.broadcast %cst_39 : f32 to vector<32x1xf32>
    %78 = arith.divf %76, %77 : vector<32x1xf32>
    %79 = arith.mulf %73, %73 : vector<32x1xf32>
    %80 = arith.subf %78, %79 : vector<32x1xf32>
    %81 = vector.broadcast %73 : vector<32x1xf32> to vector<32x32xf32>
    %82 = arith.subf %65, %81 : vector<32x32xf32>
    %cst_40 = arith.constant 9.99999974E-6 : f32
    %83 = vector.broadcast %cst_40 : f32 to vector<32x1xf32>
    %84 = arith.addf %80, %83 : vector<32x1xf32>
    %85 = math.rsqrt %84 : vector<32x1xf32>
    %86 = vector.broadcast %85 : vector<32x1xf32> to vector<32x32xf32>
    %87 = arith.mulf %82, %86 : vector<32x32xf32>
    %88 = vector.broadcast %67 : vector<1x32xf32> to vector<32x32xf32>
    %89 = arith.mulf %87, %88 : vector<32x32xf32>
    %90 = vector.broadcast %69 : vector<1x32xf32> to vector<32x32xf32>
    %91 = arith.addf %89, %90 : vector<32x32xf32>
    %92 = arith.truncf %91 : vector<32x32xf32> to vector<32x32xbf16>
    %c0_41 = arith.constant 0 : index
    %c0_42 = arith.constant 0 : index
    %c0_43 = arith.constant 0 : index
    %93 = vector.load %arg13[%c0_41, %c0_42, %c0_43] : memref<1x32x64xbf16, #tpu.memory_space<vmem>>, vector<1x32x64xbf16>
    %94 = vector.shape_cast %93 : vector<1x32x64xbf16> to vector<32x64xbf16>
    %cst_44 = arith.constant dense<0.000000e+00> : vector<32x64xf32>
    %95 = tpu.matmul %92, %94, %cst_44 {dimension_numbers = #tpu.dot_dimension_numbers<[1], [0], [0], [1], [0, 0, 1, 1], [], []>} : vector<32x32xbf16>, vector<32x64xbf16>, vector<32x64xf32> -> vector<32x64xf32>
    %c0_45 = arith.constant 0 : index
    %c0_46 = arith.constant 0 : index
    %c0_47 = arith.constant 0 : index
    %96 = vector.load %arg14[%c0_45, %c0_46, %c0_47] : memref<1x1x64xf32, #tpu.memory_space<vmem>>, vector<1x1x64xf32>
    %97 = vector.shape_cast %96 : vector<1x1x64xf32> to vector<1x64xf32>
    %98 = vector.broadcast %97 : vector<1x64xf32> to vector<32x64xf32>
    %99 = arith.addf %95, %98 : vector<32x64xf32>
    %100 = arith.mulf %99, %99 : vector<32x64xf32>
    %101 = arith.mulf %100, %99 : vector<32x64xf32>
    %cst_48 = arith.constant 4.471500e-02 : f32
    %102 = vector.broadcast %cst_48 : f32 to vector<32x64xf32>
    %103 = arith.mulf %102, %101 : vector<32x64xf32>
    %104 = arith.addf %99, %103 : vector<32x64xf32>
    %cst_49 = arith.constant 0.797884583 : f32
    %105 = vector.broadcast %cst_49 : f32 to vector<32x64xf32>
    %106 = arith.mulf %105, %104 : vector<32x64xf32>
    %cst_50 = arith.constant 5.000000e-01 : f32
    %107 = vector.broadcast %cst_50 : f32 to vector<32x64xf32>
    %108 = arith.mulf %107, %99 : vector<32x64xf32>
    %109 = math.tanh %106 : vector<32x64xf32>
    %cst_51 = arith.constant 1.000000e+00 : f32
    %110 = vector.broadcast %cst_51 : f32 to vector<32x64xf32>
    %111 = arith.addf %110, %109 : vector<32x64xf32>
    %112 = arith.mulf %108, %111 : vector<32x64xf32>
    %113 = arith.truncf %112 : vector<32x64xf32> to vector<32x64xbf16>
    %c0_52 = arith.constant 0 : index
    %c0_53 = arith.constant 0 : index
    %c0_54 = arith.constant 0 : index
    %114 = vector.load %arg15[%c0_52, %c0_53, %c0_54] : memref<1x64x32xbf16, #tpu.memory_space<vmem>>, vector<1x64x32xbf16>
    %115 = vector.shape_cast %114 : vector<1x64x32xbf16> to vector<64x32xbf16>
    %cst_55 = arith.constant dense<0.000000e+00> : vector<32x32xf32>
    %116 = tpu.matmul %113, %115, %cst_55 {dimension_numbers = #tpu.dot_dimension_numbers<[1], [0], [0], [1], [0, 0, 1, 1], [], []>} : vector<32x64xbf16>, vector<64x32xbf16>, vector<32x32xf32> -> vector<32x32xf32>
    %c0_56 = arith.constant 0 : index
    %c0_57 = arith.constant 0 : index
    %c0_58 = arith.constant 0 : index
    %117 = vector.load %arg16[%c0_56, %c0_57, %c0_58] : memref<1x1x32xf32, #tpu.memory_space<vmem>>, vector<1x1x32xf32>
    %118 = vector.shape_cast %117 : vector<1x1x32xf32> to vector<1x32xf32>
    %119 = vector.broadcast %118 : vector<1x32xf32> to vector<32x32xf32>
    %120 = arith.addf %116, %119 : vector<32x32xf32>
    %121 = arith.addf %65, %120 : vector<32x32xf32>
    %c0_59 = arith.constant 0 : index
    %c0_60 = arith.constant 0 : index
    %122 = vector.load %arg22[%c0_59, %c0_60] : memref<32x32xf32, #tpu.memory_space<vmem>>, vector<32x32xf32>
    tpu.vector_store %arg22[%c0_59, %c0_60], %121 {strides = array<i32>} : memref<32x32xf32, #tpu.memory_space<vmem>>, vector<32x32xf32>,
    %c1_i32 = arith.constant 1 : i32
    %123 = arith.cmpi eq, %arg1, %c1_i32 : i32
    %124 = arith.extui %123 : i1 to i32
    %c0_i32_61 = arith.constant 0 : i32
    %125 = arith.cmpi ne, %124, %c0_i32_61 : i32
    scf.if %125 {
      %c0_62 = arith.constant 0 : index
      %c0_63 = arith.constant 0 : index
      %126 = vector.load %arg17[%c0_62, %c0_63] : memref<1x32xf32, #tpu.memory_space<vmem>>, vector<1x32xf32>
      %c0_64 = arith.constant 0 : index
      %c0_65 = arith.constant 0 : index
      %127 = vector.load %arg18[%c0_64, %c0_65] : memref<1x32xf32, #tpu.memory_space<vmem>>, vector<1x32xf32>
      %cst_66 = arith.constant dense<0.000000e+00> : vector<32xf32>
      %128 = vector.multi_reduction <add>, %121, %cst_66 [1] : vector<32x32xf32> to vector<32xf32>
      %129 = vector.shape_cast %128 : vector<32xf32> to vector<32x1xf32>
      %cst_67 = arith.constant 3.200000e+01 : f32
      %130 = vector.broadcast %cst_67 : f32 to vector<32x1xf32>
      %131 = arith.divf %129, %130 : vector<32x1xf32>
      %132 = arith.mulf %121, %121 : vector<32x32xf32>
      %cst_68 = arith.constant dense<0.000000e+00> : vector<32xf32>
      %133 = vector.multi_reduction <add>, %132, %cst_68 [1] : vector<32x32xf32> to vector<32xf32>
      %134 = vector.shape_cast %133 : vector<32xf32> to vector<32x1xf32>
      %cst_69 = arith.constant 3.200000e+01 : f32
      %135 = vector.broadcast %cst_69 : f32 to vector<32x1xf32>
      %136 = arith.divf %134, %135 : vector<32x1xf32>
      %137 = arith.mulf %131, %131 : vector<32x1xf32>
      %138 = arith.subf %136, %137 : vector<32x1xf32>
      %139 = vector.broadcast %131 : vector<32x1xf32> to vector<32x32xf32>
      %140 = arith.subf %121, %139 : vector<32x32xf32>
      %cst_70 = arith.constant 9.99999974E-6 : f32
      %141 = vector.broadcast %cst_70 : f32 to vector<32x1xf32>
      %142 = arith.addf %138, %141 : vector<32x1xf32>
      %143 = math.rsqrt %142 : vector<32x1xf32>
      %144 = vector.broadcast %143 : vector<32x1xf32> to vector<32x32xf32>
      %145 = arith.mulf %140, %144 : vector<32x32xf32>
      %146 = vector.broadcast %126 : vector<1x32xf32> to vector<32x32xf32>
      %147 = arith.mulf %145, %146 : vector<32x32xf32>
      %148 = vector.broadcast %127 : vector<1x32xf32> to vector<32x32xf32>
      %149 = arith.addf %147, %148 : vector<32x32xf32>
      %150 = vector.extract_strided_slice %149 {offsets = [0, 0], sizes = [16, 32], strides = [1, 1]} : vector<32x32xf32> to vector<16x32xf32>
      %cst_71 = arith.constant dense<0.000000e+00> : vector<32xf32>
      %151 = vector.multi_reduction <add>, %150, %cst_71 [0] : vector<16x32xf32> to vector<32xf32>
      %152 = vector.shape_cast %151 : vector<32xf32> to vector<1x32xf32>
      %cst_72 = arith.constant 1.600000e+01 : f32
      %153 = vector.broadcast %cst_72 : f32 to vector<1x32xf32>
      %154 = arith.divf %152, %153 : vector<1x32xf32>
      %155 = vector.extract_strided_slice %149 {offsets = [16, 0], sizes = [16, 32], strides = [1, 1]} : vector<32x32xf32> to vector<16x32xf32>
      %cst_73 = arith.constant dense<0.000000e+00> : vector<32xf32>
      %156 = vector.multi_reduction <add>, %155, %cst_73 [0] : vector<16x32xf32> to vector<32xf32>
      %157 = vector.shape_cast %156 : vector<32xf32> to vector<1x32xf32>
      %cst_74 = arith.constant 1.600000e+01 : f32
      %158 = vector.broadcast %cst_74 : f32 to vector<1x32xf32>
      %159 = arith.divf %157, %158 : vector<1x32xf32>
      %160 = tpu.concatenate %154, %159 in 0 : vector<1x32xf32>, vector<1x32xf32> -> vector<2x32xf32>
      %161 = arith.truncf %160 : vector<2x32xf32> to vector<2x32xbf16>
      %c0_75 = arith.constant 0 : index
      %c0_76 = arith.constant 0 : index
      %162 = vector.load %arg19[%c0_75, %c0_76] : memref<32x128xbf16, #tpu.memory_space<vmem>>, vector<32x128xbf16>
      %cst_77 = arith.constant dense<0.000000e+00> : vector<2x128xf32>
      %163 = tpu.matmul %161, %162, %cst_77 {dimension_numbers = #tpu.dot_dimension_numbers<[1], [0], [0], [1], [0, 0, 1, 1], [], []>} : vector<2x32xbf16>, vector<32x128xbf16>, vector<2x128xf32> -> vector<2x128xf32>
      %c0_78 = arith.constant 0 : index
      %c0_79 = arith.constant 0 : index
      %164 = vector.load %arg20[%c0_78, %c0_79] : memref<1x128xf32, #tpu.memory_space<vmem>>, vector<1x128xf32>
      %165 = vector.broadcast %164 : vector<1x128xf32> to vector<2x128xf32>
      %166 = arith.addf %163, %165 : vector<2x128xf32>
      %c0_80 = arith.constant 0 : index
      %c0_81 = arith.constant 0 : index
      %c0_82 = arith.constant 0 : index
      %167 = vector.load %arg21[%c0_80, %c0_81, %c0_82] : memref<1x2x128xf32, #tpu.memory_space<vmem>>, vector<1x2x128xf32>
      %168 = vector.shape_cast %167 : vector<1x2x128xf32> to vector<2x128xf32>
      %169 = vector.shape_cast %166 : vector<2x128xf32> to vector<1x2x128xf32>
      tpu.vector_store %arg21[%c0_80, %c0_81, %c0_82], %169 {strides = array<i32>} : memref<1x2x128xf32, #tpu.memory_space<vmem>>, vector<1x2x128xf32>,
    } else {
    }
    return
  }
  func.func @transform_0(%arg0: i32, %arg1: i32) -> (i32, i32, i32) {
    %c0_i32 = arith.constant 0 : i32
    %c0_i32_0 = arith.constant 0 : i32
    %c0_i32_1 = arith.constant 0 : i32
    return %arg0, %c0_i32, %c0_i32_0 : i32, i32, i32
  }
  func.func @transform_1(%arg0: i32, %arg1: i32) -> (i32, i32) {
    %c0_i32 = arith.constant 0 : i32
    %c0_i32_0 = arith.constant 0 : i32
    %c0_i32_1 = arith.constant 0 : i32
    return %c0_i32, %c0_i32_0 : i32, i32
  }
  func.func @transform_2(%arg0: i32, %arg1: i32) -> (i32, i32) {
    %c0_i32 = arith.constant 0 : i32
    %c0_i32_0 = arith.constant 0 : i32
    %c0_i32_1 = arith.constant 0 : i32
    return %c0_i32, %c0_i32_0 : i32, i32
  }
  func.func @transform_3(%arg0: i32, %arg1: i32) -> (i32, i32, i32) {
    %c0_i32 = arith.constant 0 : i32
    %c0_i32_0 = arith.constant 0 : i32
    %c0_i32_1 = arith.constant 0 : i32
    return %arg1, %c0_i32, %c0_i32_0 : i32, i32, i32
  }
  func.func @transform_4(%arg0: i32, %arg1: i32) -> (i32, i32, i32) {
    %c0_i32 = arith.constant 0 : i32
    %c0_i32_0 = arith.constant 0 : i32
    %c0_i32_1 = arith.constant 0 : i32
    return %arg1, %c0_i32, %c0_i32_0 : i32, i32, i32
  }
  func.func @transform_5(%arg0: i32, %arg1: i32) -> (i32, i32, i32) {
    %c0_i32 = arith.constant 0 : i32
    %c0_i32_0 = arith.constant 0 : i32
    %c0_i32_1 = arith.constant 0 : i32
    return %arg1, %c0_i32, %c0_i32_0 : i32, i32, i32
  }
  func.func @transform_6(%arg0: i32, %arg1: i32) -> (i32, i32, i32) {
    %c0_i32 = arith.constant 0 : i32
    %c0_i32_0 = arith.constant 0 : i32
    %c0_i32_1 = arith.constant 0 : i32
    return %arg1, %c0_i32, %c0_i32_0 : i32, i32, i32
  }
  func.func @transform_7(%arg0: i32, %arg1: i32) -> (i32, i32, i32) {
    %c0_i32 = arith.constant 0 : i32
    %c0_i32_0 = arith.constant 0 : i32
    %c0_i32_1 = arith.constant 0 : i32
    return %arg1, %c0_i32, %c0_i32_0 : i32, i32, i32
  }
  func.func @transform_8(%arg0: i32, %arg1: i32) -> (i32, i32, i32) {
    %c0_i32 = arith.constant 0 : i32
    %c0_i32_0 = arith.constant 0 : i32
    %c0_i32_1 = arith.constant 0 : i32
    return %arg1, %c0_i32, %c0_i32_0 : i32, i32, i32
  }
  func.func @transform_9(%arg0: i32, %arg1: i32) -> (i32, i32, i32) {
    %c0_i32 = arith.constant 0 : i32
    %c0_i32_0 = arith.constant 0 : i32
    %c0_i32_1 = arith.constant 0 : i32
    return %arg1, %c0_i32, %c0_i32_0 : i32, i32, i32
  }
  func.func @transform_10(%arg0: i32, %arg1: i32) -> (i32, i32, i32) {
    %c0_i32 = arith.constant 0 : i32
    %c0_i32_0 = arith.constant 0 : i32
    %c0_i32_1 = arith.constant 0 : i32
    return %arg1, %c0_i32, %c0_i32_0 : i32, i32, i32
  }
  func.func @transform_11(%arg0: i32, %arg1: i32) -> (i32, i32, i32) {
    %c0_i32 = arith.constant 0 : i32
    %c0_i32_0 = arith.constant 0 : i32
    %c0_i32_1 = arith.constant 0 : i32
    return %arg1, %c0_i32, %c0_i32_0 : i32, i32, i32
  }
  func.func @transform_12(%arg0: i32, %arg1: i32) -> (i32, i32, i32) {
    %c0_i32 = arith.constant 0 : i32
    %c0_i32_0 = arith.constant 0 : i32
    %c0_i32_1 = arith.constant 0 : i32
    return %arg1, %c0_i32, %c0_i32_0 : i32, i32, i32
  }
  func.func @transform_13(%arg0: i32, %arg1: i32) -> (i32, i32, i32) {
    %c0_i32 = arith.constant 0 : i32
    %c0_i32_0 = arith.constant 0 : i32
    %c0_i32_1 = arith.constant 0 : i32
    return %arg1, %c0_i32, %c0_i32_0 : i32, i32, i32
  }
  func.func @transform_14(%arg0: i32, %arg1: i32) -> (i32, i32, i32) {
    %c0_i32 = arith.constant 0 : i32
    %c0_i32_0 = arith.constant 0 : i32
    %c0_i32_1 = arith.constant 0 : i32
    return %arg1, %c0_i32, %c0_i32_0 : i32, i32, i32
  }
  func.func @transform_15(%arg0: i32, %arg1: i32) -> (i32, i32) {
    %c0_i32 = arith.constant 0 : i32
    %c0_i32_0 = arith.constant 0 : i32
    %c0_i32_1 = arith.constant 0 : i32
    return %c0_i32, %c0_i32_0 : i32, i32
  }
  func.func @transform_16(%arg0: i32, %arg1: i32) -> (i32, i32) {
    %c0_i32 = arith.constant 0 : i32
    %c0_i32_0 = arith.constant 0 : i32
    %c0_i32_1 = arith.constant 0 : i32
    return %c0_i32, %c0_i32_0 : i32, i32
  }
  func.func @transform_17(%arg0: i32, %arg1: i32) -> (i32, i32) {
    %c0_i32 = arith.constant 0 : i32
    %c0_i32_0 = arith.constant 0 : i32
    %c0_i32_1 = arith.constant 0 : i32
    return %c0_i32, %c0_i32_0 : i32, i32
  }
  func.func @transform_18(%arg0: i32, %arg1: i32) -> (i32, i32) {
    %c0_i32 = arith.constant 0 : i32
    %c0_i32_0 = arith.constant 0 : i32
    %c0_i32_1 = arith.constant 0 : i32
    return %c0_i32, %c0_i32_0 : i32, i32
  }
  func.func @transform_19(%arg0: i32, %arg1: i32) -> (i32, i32, i32) {
    %c0_i32 = arith.constant 0 : i32
    %c0_i32_0 = arith.constant 0 : i32
    %c0_i32_1 = arith.constant 0 : i32
    return %arg0, %c0_i32, %c0_i32_0 : i32, i32, i32
  }
}

</mosaic_0001>

<llo_original>
// kernel: mlp_mixer_forward.1
$region0: #{mlp_mixer_forward.1}
  #allocation0 [shape = 'u32[]', space=smem, size = 0x4, offset = 0x4, fixed_abs, tag = 'smem constant byte address 0x4 - core index']
  #allocation1 [shape = 'u32[72,128]{1,0:T(1,128)}', space=vmem, size = 0x9000, scoped, tag = 'internal scratch']
  #allocation2 [shape = 'f32[32,32]{1,0:T(8,128)}', space=vmem, size = 0x4000, scoped, tag = 'scratch operand']
  %s0 = inlined_call_operand.vmem [shape: bf16[2,16,64], index: 0, kind: input, shape index: {}]
  %s1 = inlined_call_operand.vmem [shape: bf16[64,32], index: 1, kind: input, shape index: {}]
  %s2 = inlined_call_operand.vmem [shape: f32[1,32], index: 2, kind: input, shape index: {}]
  %s3 = inlined_call_operand.vmem [shape: f32[2,1,32], index: 3, kind: input, shape index: {}]
  %s4 = inlined_call_operand.vmem [shape: f32[2,1,32], index: 4, kind: input, shape index: {}]
  %s5 = inlined_call_operand.vmem [shape: bf16[2,16,16], index: 5, kind: input, shape index: {}]
  %s6 = inlined_call_operand.vmem [shape: f32[2,16,1], index: 6, kind: input, shape index: {}]
  %s7 = inlined_call_operand.vmem [shape: bf16[2,16,16], index: 7, kind: input, shape index: {}]
  %s8 = inlined_call_operand.vmem [shape: f32[2,16,1], index: 8, kind: input, shape index: {}]
  %s9 = inlined_call_operand.vmem [shape: f32[2,1,32], index: 9, kind: input, shape index: {}]
  %s10 = inlined_call_operand.vmem [shape: f32[2,1,32], index: 10, kind: input, shape index: {}]
  %s11 = inlined_call_operand.vmem [shape: bf16[2,32,64], index: 11, kind: input, shape index: {}]
  %s12 = inlined_call_operand.vmem [shape: f32[2,1,64], index: 12, kind: input, shape index: {}]
  %s13 = inlined_call_operand.vmem [shape: bf16[2,64,32], index: 13, kind: input, shape index: {}]
  %s14 = inlined_call_operand.vmem [shape: f32[2,1,32], index: 14, kind: input, shape index: {}]
  %s15 = inlined_call_operand.vmem [shape: f32[1,32], index: 15, kind: input, shape index: {}]
  %s16 = inlined_call_operand.vmem [shape: f32[1,32], index: 16, kind: input, shape index: {}]
  %s17 = inlined_call_operand.vmem [shape: bf16[32,128], index: 17, kind: input, shape index: {}]
  %s18 = inlined_call_operand.vmem [shape: f32[1,128], index: 18, kind: input, shape index: {}]
  %s19 = inlined_call_operand.hbm [shape: f32[1,2,128], index: 19, kind: output, shape index: {}]
  %s20 = sld [smem:[#allocation0]]
  $region117: #{mlp_mixer_forward.1} parent=0
    _
  %s22 = ssub.s32 1, %s20
  %s23 = scalar_select 0, %s22, %s20
  $region1: #{mlp_mixer_forward.1} parent=0
    #allocation3 [shape = 'u8[1024]{0}', space=vmem, size = 0x400, scoped, tag = 'output window, operand 0, single buffered']
    #allocation4 [shape = 's32[2]{0}', space=sflag, size = 0x8, scoped, tag = 'scoped memory for mlp_mixer_forward.1']
    %24 = vsyncpa [#allocation4], 0
    loop: start=0, step=1, limit=4
    $region2: #{mlp_mixer_forward.1} parent=1 // loop_pre_header
      _
    $region3: #{mlp_mixer_forward.1} parent=1 // loop_header
      %s26 = sphi 0, %s30
      %p27 = scmp.ge.s32.totalorder %s26, 4
      %s33 = sphi 0, %s45
      %s34 = sphi 0, %s41
      %s35 = sphi 0, %s33
      %s36 = sphi 0, %s34
      %s37 = sphi 0, %s35
      %s38 = sphi 0, %s36
      %s48 = sphi 0, %s50
      %s51 = sphi 0, %s48
      %s52 = sphi 0, %s51
      %s68 = sphi 0, %s52
      %s72 = sphi 0, %s72
      %s74 = sphi 0, %s72
      %s75 = sphi 0, %s74
      %s89 = sphi 0, %s75
      %s93 = sphi 0, %s93
      %s95 = sphi 0, %s93
      %s96 = sphi 0, %s95
      %s110 = sphi 0, %s96
      %s116 = sphi 0, %s118
      %s119 = sphi 0, %s116
      %s120 = sphi 0, %s119
      %s136 = sphi 0, %s120
      %s142 = sphi 0, %s144
      %s145 = sphi 0, %s142
      %s146 = sphi 0, %s145
      %s162 = sphi 0, %s146
      %s168 = sphi 0, %s170
      %s171 = sphi 0, %s168
      %s172 = sphi 0, %s171
      %s188 = sphi 0, %s172
      %s194 = sphi 0, %s196
      %s197 = sphi 0, %s194
      %s198 = sphi 0, %s197
      %s214 = sphi 0, %s198
      %s220 = sphi 0, %s222
      %s223 = sphi 0, %s220
      %s224 = sphi 0, %s223
      %s240 = sphi 0, %s224
      %s246 = sphi 0, %s248
      %s249 = sphi 0, %s246
      %s250 = sphi 0, %s249
      %s266 = sphi 0, %s250
      %s272 = sphi 0, %s274
      %s275 = sphi 0, %s272
      %s276 = sphi 0, %s275
      %s292 = sphi 0, %s276
      %s298 = sphi 0, %s300
      %s301 = sphi 0, %s298
      %s302 = sphi 0, %s301
      %s318 = sphi 0, %s302
      %s324 = sphi 0, %s326
      %s327 = sphi 0, %s324
      %s328 = sphi 0, %s327
      %s344 = sphi 0, %s328
      %s350 = sphi 0, %s352
      %s353 = sphi 0, %s350
      %s354 = sphi 0, %s353
      %s370 = sphi 0, %s354
      %s376 = sphi 0, %s378
      %s379 = sphi 0, %s376
      %s380 = sphi 0, %s379
      %s396 = sphi 0, %s380
      %s402 = sphi 0, %s404
      %s405 = sphi 0, %s402
      %s406 = sphi 0, %s405
      %s422 = sphi 0, %s406
      %s426 = sphi 0, %s426
      %s428 = sphi 0, %s426
      %s429 = sphi 0, %s428
      %s443 = sphi 0, %s429
      %s447 = sphi 0, %s447
      %s449 = sphi 0, %s447
      %s450 = sphi 0, %s449
      %s464 = sphi 0, %s450
      %s468 = sphi 0, %s468
      %s470 = sphi 0, %s468
      %s471 = sphi 0, %s470
      %s485 = sphi 0, %s471
      %s489 = sphi 0, %s489
      %s491 = sphi 0, %s489
      %s492 = sphi 0, %s491
      %s506 = sphi 0, %s492
      %s512 = sphi 0, %s514
      %s515 = sphi 0, %s512
      %s516 = sphi 0, %s515
      %s532 = sphi 0, %s516
    $region4: #{mlp_mixer_forward.1} parent=1 // loop_header_branch
      %29 = sbr.rel (%p27) target = $region8
    $region5: #{mlp_mixer_forward.1} parent=1 // loop_body
      %s31 = ssub.s32 %s26, 1
      %s32 = ssub.s32 %s26, 2
      %s39 = sadd.s32 1, %s34
      %p40 = scmp.ge.s32.totalorder %s39, 2
      %s41 = scalar_select %p40, 0, %s39
      %s42 = sadd.s32 1, %s33
      %s43 = scalar_select %p40, %s42, %s33
      %p44 = scmp.ge.s32.totalorder %s43, 1
      %s45 = scalar_select %p44, 0, %s43
      %s46 = ssub.s32 %s33, %s45
      %p47 = scmp.eq.s32.totalorder %s46, 0
      %s49 = sadd.s32 %s48, 1
      %s50 = scalar_select %p47, %s48, %s49
      %p53 = pneg %p47
      %p54 = scmp.eq.s32.totalorder %s26, 1
      %p55 = por %p53, %p54
      %p56 = scmp.ne.s32.totalorder %s48, %s51
      %p57 = scmp.eq.s32.totalorder %s26, 0
      %p58 = por %p56, %p57
      %p59 = scmp.ne.s32.totalorder %s48, %s51
      %p60 = scmp.eq.s32.totalorder %s31, 1
      %p61 = por %p59, %p60
      %p62 = scmp.ne.s32.totalorder %s51, %s52
      %p63 = scmp.eq.s32.totalorder %s31, 0
      %p64 = por %p62, %p63
      %p65 = scmp.ne.s32.totalorder %s51, %s52
      %p66 = scmp.eq.s32.totalorder %s32, 1
      %p67 = por %p65, %p66
      %p69 = scmp.ne.s32.totalorder %s52, %s68
      %p70 = scmp.eq.s32.totalorder %s32, 0
      %p71 = por %p69, %p70
      %s73 = sadd.s32 %s72, 1
      %p76 = scmp.eq.s32.totalorder %s26, 1
      %p77 = scmp.ne.s32.totalorder %s72, %s74
      %p78 = scmp.eq.s32.totalorder %s26, 0
      %p79 = por %p77, %p78
      %p80 = scmp.ne.s32.totalorder %s72, %s74
      %p81 = scmp.eq.s32.totalorder %s31, 1
      %p82 = por %p80, %p81
      %p83 = scmp.ne.s32.totalorder %s74, %s75
      %p84 = scmp.eq.s32.totalorder %s31, 0
      %p85 = por %p83, %p84
      %p86 = scmp.ne.s32.totalorder %s74, %s75
      %p87 = scmp.eq.s32.totalorder %s32, 1
      %p88 = por %p86, %p87
      %p90 = scmp.ne.s32.totalorder %s75, %s89
      %p91 = scmp.eq.s32.totalorder %s32, 0
      %p92 = por %p90, %p91
      %s94 = sadd.s32 %s93, 1
      %p97 = scmp.eq.s32.totalorder %s26, 1
      %p98 = scmp.ne.s32.totalorder %s93, %s95
      %p99 = scmp.eq.s32.totalorder %s26, 0
      %p100 = por %p98, %p99
      %p101 = scmp.ne.s32.totalorder %s93, %s95
      %p102 = scmp.eq.s32.totalorder %s31, 1
      %p103 = por %p101, %p102
      %p104 = scmp.ne.s32.totalorder %s95, %s96
      %p105 = scmp.eq.s32.totalorder %s31, 0
      %p106 = por %p104, %p105
      %p107 = scmp.ne.s32.totalorder %s95, %s96
      %p108 = scmp.eq.s32.totalorder %s32, 1
      %p109 = por %p107, %p108
      %p111 = scmp.ne.s32.totalorder %s96, %s110
      %p112 = scmp.eq.s32.totalorder %s32, 0
      %p113 = por %p111, %p112
      %s114 = ssub.s32 %s34, %s41
      %p115 = scmp.eq.s32.totalorder %s114, 0
      %s117 = sadd.s32 %s116, 1
      %s118 = scalar_select %p115, %s116, %s117
      %p121 = pneg %p115
      %p122 = scmp.eq.s32.totalorder %s26, 1
      %p123 = por %p121, %p122
      %p124 = scmp.ne.s32.totalorder %s116, %s119
      %p125 = scmp.eq.s32.totalorder %s26, 0
      %p126 = por %p124, %p125
      %p127 = scmp.ne.s32.totalorder %s116, %s119
      %p128 = scmp.eq.s32.totalorder %s31, 1
      %p129 = por %p127, %p128
      %p130 = scmp.ne.s32.totalorder %s119, %s120
      %p131 = scmp.eq.s32.totalorder %s31, 0
      %p132 = por %p130, %p131
      %p133 = scmp.ne.s32.totalorder %s119, %s120
      %p134 = scmp.eq.s32.totalorder %s32, 1
      %p135 = por %p133, %p134
      %p137 = scmp.ne.s32.totalorder %s120, %s136
      %p138 = scmp.eq.s32.totalorder %s32, 0
      %p139 = por %p137, %p138
      %s140 = ssub.s32 %s34, %s41
      %p141 = scmp.eq.s32.totalorder %s140, 0
      %s143 = sadd.s32 %s142, 1
      %s144 = scalar_select %p141, %s142, %s143
      %p147 = pneg %p141
      %p148 = scmp.eq.s32.totalorder %s26, 1
      %p149 = por %p147, %p148
      %p150 = scmp.ne.s32.totalorder %s142, %s145
      %p151 = scmp.eq.s32.totalorder %s26, 0
      %p152 = por %p150, %p151
      %p153 = scmp.ne.s32.totalorder %s142, %s145
      %p154 = scmp.eq.s32.totalorder %s31, 1
      %p155 = por %p153, %p154
      %p156 = scmp.ne.s32.totalorder %s145, %s146
      %p157 = scmp.eq.s32.totalorder %s31, 0
      %p158 = por %p156, %p157
      %p159 = scmp.ne.s32.totalorder %s145, %s146
      %p160 = scmp.eq.s32.totalorder %s32, 1
      %p161 = por %p159, %p160
      %p163 = scmp.ne.s32.totalorder %s146, %s162
      %p164 = scmp.eq.s32.totalorder %s32, 0
      %p165 = por %p163, %p164
      %s166 = ssub.s32 %s34, %s41
      %p167 = scmp.eq.s32.totalorder %s166, 0
      %s169 = sadd.s32 %s168, 1
      %s170 = scalar_select %p167, %s168, %s169
      %p173 = pneg %p167
      %p174 = scmp.eq.s32.totalorder %s26, 1
      %p175 = por %p173, %p174
      %p176 = scmp.ne.s32.totalorder %s168, %s171
      %p177 = scmp.eq.s32.totalorder %s26, 0
      %p178 = por %p176, %p177
      %p179 = scmp.ne.s32.totalorder %s168, %s171
      %p180 = scmp.eq.s32.totalorder %s31, 1
      %p181 = por %p179, %p180
      %p182 = scmp.ne.s32.totalorder %s171, %s172
      %p183 = scmp.eq.s32.totalorder %s31, 0
      %p184 = por %p182, %p183
      %p185 = scmp.ne.s32.totalorder %s171, %s172
      %p186 = scmp.eq.s32.totalorder %s32, 1
      %p187 = por %p185, %p186
      %p189 = scmp.ne.s32.totalorder %s172, %s188
      %p190 = scmp.eq.s32.totalorder %s32, 0
      %p191 = por %p189, %p190
      %s192 = ssub.s32 %s34, %s41
      %p193 = scmp.eq.s32.totalorder %s192, 0
      %s195 = sadd.s32 %s194, 1
      %s196 = scalar_select %p193, %s194, %s195
      %p199 = pneg %p193
      %p200 = scmp.eq.s32.totalorder %s26, 1
      %p201 = por %p199, %p200
      %p202 = scmp.ne.s32.totalorder %s194, %s197
      %p203 = scmp.eq.s32.totalorder %s26, 0
      %p204 = por %p202, %p203
      %p205 = scmp.ne.s32.totalorder %s194, %s197
      %p206 = scmp.eq.s32.totalorder %s31, 1
      %p207 = por %p205, %p206
      %p208 = scmp.ne.s32.totalorder %s197, %s198
      %p209 = scmp.eq.s32.totalorder %s31, 0
      %p210 = por %p208, %p209
      %p211 = scmp.ne.s32.totalorder %s197, %s198
      %p212 = scmp.eq.s32.totalorder %s32, 1
      %p213 = por %p211, %p212
      %p215 = scmp.ne.s32.totalorder %s198, %s214
      %p216 = scmp.eq.s32.totalorder %s32, 0
      %p217 = por %p215, %p216
      %s218 = ssub.s32 %s34, %s41
      %p219 = scmp.eq.s32.totalorder %s218, 0
      %s221 = sadd.s32 %s220, 1
      %s222 = scalar_select %p219, %s220, %s221
      %p225 = pneg %p219
      %p226 = scmp.eq.s32.totalorder %s26, 1
      %p227 = por %p225, %p226
      %p228 = scmp.ne.s32.totalorder %s220, %s223
      %p229 = scmp.eq.s32.totalorder %s26, 0
      %p230 = por %p228, %p229
      %p231 = scmp.ne.s32.totalorder %s220, %s223
      %p232 = scmp.eq.s32.totalorder %s31, 1
      %p233 = por %p231, %p232
      %p234 = scmp.ne.s32.totalorder %s223, %s224
      %p235 = scmp.eq.s32.totalorder %s31, 0
      %p236 = por %p234, %p235
      %p237 = scmp.ne.s32.totalorder %s223, %s224
      %p238 = scmp.eq.s32.totalorder %s32, 1
      %p239 = por %p237, %p238
      %p241 = scmp.ne.s32.totalorder %s224, %s240
      %p242 = scmp.eq.s32.totalorder %s32, 0
      %p243 = por %p241, %p242
      %s244 = ssub.s32 %s34, %s41
      %p245 = scmp.eq.s32.totalorder %s244, 0
      %s247 = sadd.s32 %s246, 1
      %s248 = scalar_select %p245, %s246, %s247
      %p251 = pneg %p245
      %p252 = scmp.eq.s32.totalorder %s26, 1
      %p253 = por %p251, %p252
      %p254 = scmp.ne.s32.totalorder %s246, %s249
      %p255 = scmp.eq.s32.totalorder %s26, 0
      %p256 = por %p254, %p255
      %p257 = scmp.ne.s32.totalorder %s246, %s249
      %p258 = scmp.eq.s32.totalorder %s31, 1
      %p259 = por %p257, %p258
      %p260 = scmp.ne.s32.totalorder %s249, %s250
      %p261 = scmp.eq.s32.totalorder %s31, 0
      %p262 = por %p260, %p261
      %p263 = scmp.ne.s32.totalorder %s249, %s250
      %p264 = scmp.eq.s32.totalorder %s32, 1
      %p265 = por %p263, %p264
      %p267 = scmp.ne.s32.totalorder %s250, %s266
      %p268 = scmp.eq.s32.totalorder %s32, 0
      %p269 = por %p267, %p268
      %s270 = ssub.s32 %s34, %s41
      %p271 = scmp.eq.s32.totalorder %s270, 0
      %s273 = sadd.s32 %s272, 1
      %s274 = scalar_select %p271, %s272, %s273
      %p277 = pneg %p271
      %p278 = scmp.eq.s32.totalorder %s26, 1
      %p279 = por %p277, %p278
      %p280 = scmp.ne.s32.totalorder %s272, %s275
      %p281 = scmp.eq.s32.totalorder %s26, 0
      %p282 = por %p280, %p281
      %p283 = scmp.ne.s32.totalorder %s272, %s275
      %p284 = scmp.eq.s32.totalorder %s31, 1
      %p285 = por %p283, %p284
      %p286 = scmp.ne.s32.totalorder %s275, %s276
      %p287 = scmp.eq.s32.totalorder %s31, 0
      %p288 = por %p286, %p287
      %p289 = scmp.ne.s32.totalorder %s275, %s276
      %p290 = scmp.eq.s32.totalorder %s32, 1
      %p291 = por %p289, %p290
      %p293 = scmp.ne.s32.totalorder %s276, %s292
      %p294 = scmp.eq.s32.totalorder %s32, 0
      %p295 = por %p293, %p294
      %s296 = ssub.s32 %s34, %s41
      %p297 = scmp.eq.s32.totalorder %s296, 0
      %s299 = sadd.s32 %s298, 1
      %s300 = scalar_select %p297, %s298, %s299
      %p303 = pneg %p297
      %p304 = scmp.eq.s32.totalorder %s26, 1
      %p305 = por %p303, %p304
      %p306 = scmp.ne.s32.totalorder %s298, %s301
      %p307 = scmp.eq.s32.totalorder %s26, 0
      %p308 = por %p306, %p307
      %p309 = scmp.ne.s32.totalorder %s298, %s301
      %p310 = scmp.eq.s32.totalorder %s31, 1
      %p311 = por %p309, %p310
      %p312 = scmp.ne.s32.totalorder %s301, %s302
      %p313 = scmp.eq.s32.totalorder %s31, 0
      %p314 = por %p312, %p313
      %p315 = scmp.ne.s32.totalorder %s301, %s302
      %p316 = scmp.eq.s32.totalorder %s32, 1
      %p317 = por %p315, %p316
      %p319 = scmp.ne.s32.totalorder %s302, %s318
      %p320 = scmp.eq.s32.totalorder %s32, 0
      %p321 = por %p319, %p320
      %s322 = ssub.s32 %s34, %s41
      %p323 = scmp.eq.s32.totalorder %s322, 0
      %s325 = sadd.s32 %s324, 1
      %s326 = scalar_select %p323, %s324, %s325
      %p329 = pneg %p323
      %p330 = scmp.eq.s32.totalorder %s26, 1
      %p331 = por %p329, %p330
      %p332 = scmp.ne.s32.totalorder %s324, %s327
      %p333 = scmp.eq.s32.totalorder %s26, 0
      %p334 = por %p332, %p333
      %p335 = scmp.ne.s32.totalorder %s324, %s327
      %p336 = scmp.eq.s32.totalorder %s31, 1
      %p337 = por %p335, %p336
      %p338 = scmp.ne.s32.totalorder %s327, %s328
      %p339 = scmp.eq.s32.totalorder %s31, 0
      %p340 = por %p338, %p339
      %p341 = scmp.ne.s32.totalorder %s327, %s328
      %p342 = scmp.eq.s32.totalorder %s32, 1
      %p343 = por %p341, %p342
      %p345 = scmp.ne.s32.totalorder %s328, %s344
      %p346 = scmp.eq.s32.totalorder %s32, 0
      %p347 = por %p345, %p346
      %s348 = ssub.s32 %s34, %s41
      %p349 = scmp.eq.s32.totalorder %s348, 0
      %s351 = sadd.s32 %s350, 1
      %s352 = scalar_select %p349, %s350, %s351
      %p355 = pneg %p349
      %p356 = scmp.eq.s32.totalorder %s26, 1
      %p357 = por %p355, %p356
      %p358 = scmp.ne.s32.totalorder %s350, %s353
      %p359 = scmp.eq.s32.totalorder %s26, 0
      %p360 = por %p358, %p359
      %p361 = scmp.ne.s32.totalorder %s350, %s353
      %p362 = scmp.eq.s32.totalorder %s31, 1
      %p363 = por %p361, %p362
      %p364 = scmp.ne.s32.totalorder %s353, %s354
      %p365 = scmp.eq.s32.totalorder %s31, 0
      %p366 = por %p364, %p365
      %p367 = scmp.ne.s32.totalorder %s353, %s354
      %p368 = scmp.eq.s32.totalorder %s32, 1
      %p369 = por %p367, %p368
      %p371 = scmp.ne.s32.totalorder %s354, %s370
      %p372 = scmp.eq.s32.totalorder %s32, 0
      %p373 = por %p371, %p372
      %s374 = ssub.s32 %s34, %s41
      %p375 = scmp.eq.s32.totalorder %s374, 0
      %s377 = sadd.s32 %s376, 1
      %s378 = scalar_select %p375, %s376, %s377
      %p381 = pneg %p375
      %p382 = scmp.eq.s32.totalorder %s26, 1
      %p383 = por %p381, %p382
      %p384 = scmp.ne.s32.totalorder %s376, %s379
      %p385 = scmp.eq.s32.totalorder %s26, 0
      %p386 = por %p384, %p385
      %p387 = scmp.ne.s32.totalorder %s376, %s379
      %p388 = scmp.eq.s32.totalorder %s31, 1
      %p389 = por %p387, %p388
      %p390 = scmp.ne.s32.totalorder %s379, %s380
      %p391 = scmp.eq.s32.totalorder %s31, 0
      %p392 = por %p390, %p391
      %p393 = scmp.ne.s32.totalorder %s379, %s380
      %p394 = scmp.eq.s32.totalorder %s32, 1
      %p395 = por %p393, %p394
      %p397 = scmp.ne.s32.totalorder %s380, %s396
      %p398 = scmp.eq.s32.totalorder %s32, 0
      %p399 = por %p397, %p398
      %s400 = ssub.s32 %s34, %s41
      %p401 = scmp.eq.s32.totalorder %s400, 0
      %s403 = sadd.s32 %s402, 1
      %s404 = scalar_select %p401, %s402, %s403
      %p407 = pneg %p401
      %p408 = scmp.eq.s32.totalorder %s26, 1
      %p409 = por %p407, %p408
      %p410 = scmp.ne.s32.totalorder %s402, %s405
      %p411 = scmp.eq.s32.totalorder %s26, 0
      %p412 = por %p410, %p411
      %p413 = scmp.ne.s32.totalorder %s402, %s405
      %p414 = scmp.eq.s32.totalorder %s31, 1
      %p415 = por %p413, %p414
      %p416 = scmp.ne.s32.totalorder %s405, %s406
      %p417 = scmp.eq.s32.totalorder %s31, 0
      %p418 = por %p416, %p417
      %p419 = scmp.ne.s32.totalorder %s405, %s406
      %p420 = scmp.eq.s32.totalorder %s32, 1
      %p421 = por %p419, %p420
      %p423 = scmp.ne.s32.totalorder %s406, %s422
      %p424 = scmp.eq.s32.totalorder %s32, 0
      %p425 = por %p423, %p424
      %s427 = sadd.s32 %s426, 1
      %p430 = scmp.eq.s32.totalorder %s26, 1
      %p431 = scmp.ne.s32.totalorder %s426, %s428
      %p432 = scmp.eq.s32.totalorder %s26, 0
      %p433 = por %p431, %p432
      %p434 = scmp.ne.s32.totalorder %s426, %s428
      %p435 = scmp.eq.s32.totalorder %s31, 1
      %p436 = por %p434, %p435
      %p437 = scmp.ne.s32.totalorder %s428, %s429
      %p438 = scmp.eq.s32.totalorder %s31, 0
      %p439 = por %p437, %p438
      %p440 = scmp.ne.s32.totalorder %s428, %s429
      %p441 = scmp.eq.s32.totalorder %s32, 1
      %p442 = por %p440, %p441
      %p444 = scmp.ne.s32.totalorder %s429, %s443
      %p445 = scmp.eq.s32.totalorder %s32, 0
      %p446 = por %p444, %p445
      %s448 = sadd.s32 %s447, 1
      %p451 = scmp.eq.s32.totalorder %s26, 1
      %p452 = scmp.ne.s32.totalorder %s447, %s449
      %p453 = scmp.eq.s32.totalorder %s26, 0
      %p454 = por %p452, %p453
      %p455 = scmp.ne.s32.totalorder %s447, %s449
      %p456 = scmp.eq.s32.totalorder %s31, 1
      %p457 = por %p455, %p456
      %p458 = scmp.ne.s32.totalorder %s449, %s450
      %p459 = scmp.eq.s32.totalorder %s31, 0
      %p460 = por %p458, %p459
      %p461 = scmp.ne.s32.totalorder %s449, %s450
      %p462 = scmp.eq.s32.totalorder %s32, 1
      %p463 = por %p461, %p462
      %p465 = scmp.ne.s32.totalorder %s450, %s464
      %p466 = scmp.eq.s32.totalorder %s32, 0
      %p467 = por %p465, %p466
      %s469 = sadd.s32 %s468, 1
      %p472 = scmp.eq.s32.totalorder %s26, 1
      %p473 = scmp.ne.s32.totalorder %s468, %s470
      %p474 = scmp.eq.s32.totalorder %s26, 0
      %p475 = por %p473, %p474
      %p476 = scmp.ne.s32.totalorder %s468, %s470
      %p477 = scmp.eq.s32.totalorder %s31, 1
      %p478 = por %p476, %p477
      %p479 = scmp.ne.s32.totalorder %s470, %s471
      %p480 = scmp.eq.s32.totalorder %s31, 0
      %p481 = por %p479, %p480
      %p482 = scmp.ne.s32.totalorder %s470, %s471
      %p483 = scmp.eq.s32.totalorder %s32, 1
      %p484 = por %p482, %p483
      %p486 = scmp.ne.s32.totalorder %s471, %s485
      %p487 = scmp.eq.s32.totalorder %s32, 0
      %p488 = por %p486, %p487
      %s490 = sadd.s32 %s489, 1
      %p493 = scmp.eq.s32.totalorder %s26, 1
      %p494 = scmp.ne.s32.totalorder %s489, %s491
      %p495 = scmp.eq.s32.totalorder %s26, 0
      %p496 = por %p494, %p495
      %p497 = scmp.ne.s32.totalorder %s489, %s491
      %p498 = scmp.eq.s32.totalorder %s31, 1
      %p499 = por %p497, %p498
      %p500 = scmp.ne.s32.totalorder %s491, %s492
      %p501 = scmp.eq.s32.totalorder %s31, 0
      %p502 = por %p500, %p501
      %p503 = scmp.ne.s32.totalorder %s491, %s492
      %p504 = scmp.eq.s32.totalorder %s32, 1
      %p505 = por %p503, %p504
      %p507 = scmp.ne.s32.totalorder %s492, %s506
      %p508 = scmp.eq.s32.totalorder %s32, 0
      %p509 = por %p507, %p508
      %s510 = ssub.s32 %s33, %s45
      %p511 = scmp.eq.s32.totalorder %s510, 0
      %s513 = sadd.s32 %s512, 1
      %s514 = scalar_select %p511, %s512, %s513
      %p517 = pneg %p511
      %p518 = scmp.eq.s32.totalorder %s26, 1
      %p519 = por %p517, %p518
      %p520 = scmp.ne.s32.totalorder %s512, %s515
      %p521 = scmp.eq.s32.totalorder %s26, 0
      %p522 = por %p520, %p521
      %p523 = scmp.ne.s32.totalorder %s512, %s515
      %p524 = scmp.eq.s32.totalorder %s31, 1
      %p525 = por %p523, %p524
      %p526 = scmp.ne.s32.totalorder %s515, %s516
      %p527 = scmp.eq.s32.totalorder %s31, 0
      %p528 = por %p526, %p527
      %p529 = scmp.ne.s32.totalorder %s515, %s516
      %p530 = scmp.eq.s32.totalorder %s32, 1
      %p531 = por %p529, %p530
      %p533 = scmp.ne.s32.totalorder %s516, %s532
      %p534 = scmp.eq.s32.totalorder %s32, 0
      %p535 = por %p533, %p534
      %p536 = scmp.le.s32.totalorder 1, %s26
      %p537 = scmp.lt.s32.totalorder %s26, 3
      %p538 = pnand %p536, %p537
      %p539 = pneg %p538
      // Predicated region
      $region9: #{mlp_mixer_forward.1} parent=5 // pred_check
        _
      $region10: #{mlp_mixer_forward.1} parent=5 // pred_check_branch
        %541 = sbr.rel (%p538) target = $region12
      $region11: #{mlp_mixer_forward.1} parent=5 // pred_region
        %s542 = ssub.s32 %s26, 1
        // Predicated region
        $region13: #{mlp_mixer_forward.1} parent=11 // pred_check
          %p543 = pneg %p64
        $region14: #{mlp_mixer_forward.1} parent=11 // pred_check_branch
          %545 = sbr.rel (%p543) target = $region16
        $region15: #{mlp_mixer_forward.1} parent=11 // pred_region
          %s546 = smul.u32 2, %s35
          %p547 = scmp.lt.s32.totalorder %s546, 1
          %s548 = scalar_select %p547, %s546, 1
          %s549 = smul.addr %s548, 2
          %s550 = smul.addr %s549, 4
          %s551 = scalar_lea.vmem %s0, %s550
          %s552 = smul.u32 2, %s35
        $region16: #{mlp_mixer_forward.1} parent=11 // pred_fallthru
          _
        // Predicated region
        $region17: #{mlp_mixer_forward.1} parent=11 // pred_check
          %p553 = pneg %p85
        $region18: #{mlp_mixer_forward.1} parent=11 // pred_check_branch
          %555 = sbr.rel (%p553) target = $region20
        $region19: #{mlp_mixer_forward.1} parent=11 // pred_region
          _
        $region20: #{mlp_mixer_forward.1} parent=11 // pred_fallthru
          _
        // Predicated region
        $region21: #{mlp_mixer_forward.1} parent=11 // pred_check
          %p556 = pneg %p106
        $region22: #{mlp_mixer_forward.1} parent=11 // pred_check_branch
          %558 = sbr.rel (%p556) target = $region24
        $region23: #{mlp_mixer_forward.1} parent=11 // pred_region
          _
        $region24: #{mlp_mixer_forward.1} parent=11 // pred_fallthru
          _
        // Predicated region
        $region25: #{mlp_mixer_forward.1} parent=11 // pred_check
          %p559 = pneg %p439
        $region26: #{mlp_mixer_forward.1} parent=11 // pred_check_branch
          %561 = sbr.rel (%p559) target = $region28
        $region27: #{mlp_mixer_forward.1} parent=11 // pred_region
          _
        $region28: #{mlp_mixer_forward.1} parent=11 // pred_fallthru
          _
        // Predicated region
        $region29: #{mlp_mixer_forward.1} parent=11 // pred_check
          %p562 = pneg %p460
        $region30: #{mlp_mixer_forward.1} parent=11 // pred_check_branch
          %564 = sbr.rel (%p562) target = $region32
        $region31: #{mlp_mixer_forward.1} parent=11 // pred_region
          _
        $region32: #{mlp_mixer_forward.1} parent=11 // pred_fallthru
          _
        // Predicated region
        $region33: #{mlp_mixer_forward.1} parent=11 // pred_check
          %p565 = pneg %p481
        $region34: #{mlp_mixer_forward.1} parent=11 // pred_check_branch
          %567 = sbr.rel (%p565) target = $region36
        $region35: #{mlp_mixer_forward.1} parent=11 // pred_region
          _
        $region36: #{mlp_mixer_forward.1} parent=11 // pred_fallthru
          _
        // Predicated region
        $region37: #{mlp_mixer_forward.1} parent=11 // pred_check
          %p568 = pneg %p502
        $region38: #{mlp_mixer_forward.1} parent=11 // pred_check_branch
          %570 = sbr.rel (%p568) target = $region40
        $region39: #{mlp_mixer_forward.1} parent=11 // pred_region
          _
        $region40: #{mlp_mixer_forward.1} parent=11 // pred_fallthru
          _
      $region12: #{mlp_mixer_forward.1} parent=5 // pred_fallthru
        _
      %p571 = scmp.lt.s32.totalorder %s26, 2
      // Predicated region
      $region41: #{mlp_mixer_forward.1} parent=5 // pred_check
        %p572 = pneg %p571
      $region42: #{mlp_mixer_forward.1} parent=5 // pred_check_branch
        %574 = sbr.rel (%p572) target = $region44
      $region43: #{mlp_mixer_forward.1} parent=5 // pred_region
        // Predicated region
        $region45: #{mlp_mixer_forward.1} parent=43 // pred_check
          %p575 = pneg %p126
        $region46: #{mlp_mixer_forward.1} parent=43 // pred_check_branch
          %577 = sbr.rel (%p575) target = $region48
        $region47: #{mlp_mixer_forward.1} parent=43 // pred_region
          %p578 = scmp.lt.s32.totalorder %s34, 1
          %s579 = scalar_select %p578, %s34, 1
          %s580 = scalar_lea.vmem %s3, %s579
        $region48: #{mlp_mixer_forward.1} parent=43 // pred_fallthru
          _
        // Predicated region
        $region49: #{mlp_mixer_forward.1} parent=43 // pred_check
          %p581 = pneg %p152
        $region50: #{mlp_mixer_forward.1} parent=43 // pred_check_branch
          %583 = sbr.rel (%p581) target = $region52
        $region51: #{mlp_mixer_forward.1} parent=43 // pred_region
          %p584 = scmp.lt.s32.totalorder %s34, 1
          %s585 = scalar_select %p584, %s34, 1
          %s586 = scalar_lea.vmem %s4, %s585
        $region52: #{mlp_mixer_forward.1} parent=43 // pred_fallthru
          _
        // Predicated region
        $region53: #{mlp_mixer_forward.1} parent=43 // pred_check
          %p587 = pneg %p178
        $region54: #{mlp_mixer_forward.1} parent=43 // pred_check_branch
          %589 = sbr.rel (%p587) target = $region56
        $region55: #{mlp_mixer_forward.1} parent=43 // pred_region
          %p590 = scmp.lt.s32.totalorder %s34, 1
          %s591 = scalar_select %p590, %s34, 1
          %s592 = smul.addr %s591, 2
          %s593 = smul.addr %s592, 4
          %s594 = scalar_lea.vmem %s5, %s593
        $region56: #{mlp_mixer_forward.1} parent=43 // pred_fallthru
          _
        // Predicated region
        $region57: #{mlp_mixer_forward.1} parent=43 // pred_check
          %p595 = pneg %p204
        $region58: #{mlp_mixer_forward.1} parent=43 // pred_check_branch
          %597 = sbr.rel (%p595) target = $region60
        $region59: #{mlp_mixer_forward.1} parent=43 // pred_region
          %p598 = scmp.lt.s32.totalorder %s34, 1
          %s599 = scalar_select %p598, %s34, 1
          %s600 = smul.addr %s599, 2
          %s601 = smul.addr %s600, 8
          %s602 = scalar_lea.vmem %s6, %s601
        $region60: #{mlp_mixer_forward.1} parent=43 // pred_fallthru
          _
        // Predicated region
        $region61: #{mlp_mixer_forward.1} parent=43 // pred_check
          %p603 = pneg %p230
        $region62: #{mlp_mixer_forward.1} parent=43 // pred_check_branch
          %605 = sbr.rel (%p603) target = $region64
        $region63: #{mlp_mixer_forward.1} parent=43 // pred_region
          %p606 = scmp.lt.s32.totalorder %s34, 1
          %s607 = scalar_select %p606, %s34, 1
          %s608 = smul.addr %s607, 2
          %s609 = smul.addr %s608, 4
          %s610 = scalar_lea.vmem %s7, %s609
        $region64: #{mlp_mixer_forward.1} parent=43 // pred_fallthru
          _
        // Predicated region
        $region65: #{mlp_mixer_forward.1} parent=43 // pred_check
          %p611 = pneg %p256
        $region66: #{mlp_mixer_forward.1} parent=43 // pred_check_branch
          %613 = sbr.rel (%p611) target = $region68
        $region67: #{mlp_mixer_forward.1} parent=43 // pred_region
          %p614 = scmp.lt.s32.totalorder %s34, 1
          %s615 = scalar_select %p614, %s34, 1
          %s616 = smul.addr %s615, 2
          %s617 = smul.addr %s616, 8
          %s618 = scalar_lea.vmem %s8, %s617
        $region68: #{mlp_mixer_forward.1} parent=43 // pred_fallthru
          _
        // Predicated region
        $region69: #{mlp_mixer_forward.1} parent=43 // pred_check
          %p619 = pneg %p282
        $region70: #{mlp_mixer_forward.1} parent=43 // pred_check_branch
          %621 = sbr.rel (%p619) target = $region72
        $region71: #{mlp_mixer_forward.1} parent=43 // pred_region
          %p622 = scmp.lt.s32.totalorder %s34, 1
          %s623 = scalar_select %p622, %s34, 1
          %s624 = scalar_lea.vmem %s9, %s623
        $region72: #{mlp_mixer_forward.1} parent=43 // pred_fallthru
          _
        // Predicated region
        $region73: #{mlp_mixer_forward.1} parent=43 // pred_check
          %p625 = pneg %p308
        $region74: #{mlp_mixer_forward.1} parent=43 // pred_check_branch
          %627 = sbr.rel (%p625) target = $region76
        $region75: #{mlp_mixer_forward.1} parent=43 // pred_region
          %p628 = scmp.lt.s32.totalorder %s34, 1
          %s629 = scalar_select %p628, %s34, 1
          %s630 = scalar_lea.vmem %s10, %s629
        $region76: #{mlp_mixer_forward.1} parent=43 // pred_fallthru
          _
        // Predicated region
        $region77: #{mlp_mixer_forward.1} parent=43 // pred_check
          %p631 = pneg %p334
        $region78: #{mlp_mixer_forward.1} parent=43 // pred_check_branch
          %633 = sbr.rel (%p631) target = $region80
        $region79: #{mlp_mixer_forward.1} parent=43 // pred_region
          %p634 = scmp.lt.s32.totalorder %s34, 1
          %s635 = scalar_select %p634, %s34, 1
          %s636 = smul.addr %s635, 4
          %s637 = smul.addr %s636, 4
          %s638 = scalar_lea.vmem %s11, %s637
        $region80: #{mlp_mixer_forward.1} parent=43 // pred_fallthru
          _
        // Predicated region
        $region81: #{mlp_mixer_forward.1} parent=43 // pred_check
          %p639 = pneg %p360
        $region82: #{mlp_mixer_forward.1} parent=43 // pred_check_branch
          %641 = sbr.rel (%p639) target = $region84
        $region83: #{mlp_mixer_forward.1} parent=43 // pred_region
          %p642 = scmp.lt.s32.totalorder %s34, 1
          %s643 = scalar_select %p642, %s34, 1
          %s644 = scalar_lea.vmem %s12, %s643
        $region84: #{mlp_mixer_forward.1} parent=43 // pred_fallthru
          _
        // Predicated region
        $region85: #{mlp_mixer_forward.1} parent=43 // pred_check
          %p645 = pneg %p386
        $region86: #{mlp_mixer_forward.1} parent=43 // pred_check_branch
          %647 = sbr.rel (%p645) target = $region88
        $region87: #{mlp_mixer_forward.1} parent=43 // pred_region
          %p648 = scmp.lt.s32.totalorder %s34, 1
          %s649 = scalar_select %p648, %s34, 1
          %s650 = smul.addr %s649, 8
          %s651 = smul.addr %s650, 4
          %s652 = scalar_lea.vmem %s13, %s651
        $region88: #{mlp_mixer_forward.1} parent=43 // pred_fallthru
          _
        // Predicated region
        $region89: #{mlp_mixer_forward.1} parent=43 // pred_check
          %p653 = pneg %p412
        $region90: #{mlp_mixer_forward.1} parent=43 // pred_check_branch
          %655 = sbr.rel (%p653) target = $region92
        $region91: #{mlp_mixer_forward.1} parent=43 // pred_region
          %p656 = scmp.lt.s32.totalorder %s34, 1
          %s657 = scalar_select %p656, %s34, 1
          %s658 = scalar_lea.vmem %s14, %s657
        $region92: #{mlp_mixer_forward.1} parent=43 // pred_fallthru
          _
      $region44: #{mlp_mixer_forward.1} parent=5 // pred_fallthru
        _
      %p659 = scmp.le.s32.totalorder 1, %s26
      %p660 = scmp.lt.s32.totalorder %s26, 3
      %p661 = pnand %p659, %p660
      %p662 = pneg %p661
      // Predicated region
      $region93: #{mlp_mixer_forward.1} parent=5 // pred_check
        _
      $region94: #{mlp_mixer_forward.1} parent=5 // pred_check_branch
        %664 = sbr.rel (%p661) target = $region96
      $region95: #{mlp_mixer_forward.1} parent=5 // pred_region
        %s665 = ssub.s32 %s26, 1
        %s666 = smul.u32 2, %s35
        %p667 = scmp.lt.s32.totalorder %s666, 1
        %s668 = scalar_select %p667, %s666, 1
        %s669 = smul.addr %s668, 2
        %s670 = smul.addr %s669, 4
        %s671 = scalar_lea.vmem %s0, %s670
        %p672 = pneg %p64
        %p673 = pneg %p61
        %p674 = pneg %p85
        %p675 = pneg %p82
        %p676 = pneg %p106
        %p677 = pneg %p103
        %p678 = scmp.lt.s32.totalorder %s36, 1
        %s679 = scalar_select %p678, %s36, 1
        %s680 = scalar_lea.vmem %s3, %s679
        %p681 = pneg %p132
        %p682 = pneg %p129
        %p683 = scmp.lt.s32.totalorder %s36, 1
        %s684 = scalar_select %p683, %s36, 1
        %s685 = scalar_lea.vmem %s4, %s684
        %p686 = pneg %p158
        %p687 = pneg %p155
        %p688 = scmp.lt.s32.totalorder %s36, 1
        %s689 = scalar_select %p688, %s36, 1
        %s690 = smul.addr %s689, 2
        %s691 = smul.addr %s690, 4
        %s692 = scalar_lea.vmem %s5, %s691
        %p693 = pneg %p184
        %p694 = pneg %p181
        %p695 = scmp.lt.s32.totalorder %s36, 1
        %s696 = scalar_select %p695, %s36, 1
        %s697 = smul.addr %s696, 2
        %s698 = smul.addr %s697, 8
        %s699 = scalar_lea.vmem %s6, %s698
        %p700 = pneg %p210
        %p701 = pneg %p207
        %p702 = scmp.lt.s32.totalorder %s36, 1
        %s703 = scalar_select %p702, %s36, 1
        %s704 = smul.addr %s703, 2
        %s705 = smul.addr %s704, 4
        %s706 = scalar_lea.vmem %s7, %s705
        %p707 = pneg %p236
        %p708 = pneg %p233
        %p709 = scmp.lt.s32.totalorder %s36, 1
        %s710 = scalar_select %p709, %s36, 1
        %s711 = smul.addr %s710, 2
        %s712 = smul.addr %s711, 8
        %s713 = scalar_lea.vmem %s8, %s712
        %p714 = pneg %p262
        %p715 = pneg %p259
        %p716 = scmp.lt.s32.totalorder %s36, 1
        %s717 = scalar_select %p716, %s36, 1
        %s718 = scalar_lea.vmem %s9, %s717
        %p719 = pneg %p288
        %p720 = pneg %p285
        %p721 = scmp.lt.s32.totalorder %s36, 1
        %s722 = scalar_select %p721, %s36, 1
        %s723 = scalar_lea.vmem %s10, %s722
        %p724 = pneg %p314
        %p725 = pneg %p311
        %p726 = scmp.lt.s32.totalorder %s36, 1
        %s727 = scalar_select %p726, %s36, 1
        %s728 = smul.addr %s727, 4
        %s729 = smul.addr %s728, 4
        %s730 = scalar_lea.vmem %s11, %s729
        %p731 = pneg %p340
        %p732 = pneg %p337
        %p733 = scmp.lt.s32.totalorder %s36, 1
        %s734 = scalar_select %p733, %s36, 1
        %s735 = scalar_lea.vmem %s12, %s734
        %p736 = pneg %p366
        %p737 = pneg %p363
        %p738 = scmp.lt.s32.totalorder %s36, 1
        %s739 = scalar_select %p738, %s36, 1
        %s740 = smul.addr %s739, 8
        %s741 = smul.addr %s740, 4
        %s742 = scalar_lea.vmem %s13, %s741
        %p743 = pneg %p392
        %p744 = pneg %p389
        %p745 = scmp.lt.s32.totalorder %s36, 1
        %s746 = scalar_select %p745, %s36, 1
        %s747 = scalar_lea.vmem %s14, %s746
        %p748 = pneg %p418
        %p749 = pneg %p415
        %p750 = pneg %p439
        %p751 = pneg %p436
        %p752 = pneg %p460
        %p753 = pneg %p457
        %p754 = pneg %p481
        %p755 = pneg %p478
        %p756 = pneg %p502
        %p757 = pneg %p499
        %p758 = pneg %p528
        %p759 = pneg %p525
        %s760 = smul.u32 2, %s35
        %p761 = scmp.lt.s32.totalorder %s760, 1
        %s762 = scalar_select %p761, %s760, 1
        %s763 = smul.addr %s762, 2
        %s764 = smul.addr %s763, 4
        %s765 = scalar_lea.vmem %s0, %s764
        %s766 = smul.u32 2, %s35
        %p767 = scmp.lt.s32.totalorder %s36, 1
        %s768 = scalar_select %p767, %s36, 1
        %s769 = scalar_lea.vmem %s3, %s768
        %p770 = scmp.lt.s32.totalorder %s36, 1
        %s771 = scalar_select %p770, %s36, 1
        %s772 = scalar_lea.vmem %s4, %s771
        %p773 = scmp.lt.s32.totalorder %s36, 1
        %s774 = scalar_select %p773, %s36, 1
        %s775 = smul.addr %s774, 2
        %s776 = smul.addr %s775, 4
        %s777 = scalar_lea.vmem %s5, %s776
        %p778 = scmp.lt.s32.totalorder %s36, 1
        %s779 = scalar_select %p778, %s36, 1
        %s780 = smul.addr %s779, 2
        %s781 = smul.addr %s780, 8
        %s782 = scalar_lea.vmem %s6, %s781
        %p783 = scmp.lt.s32.totalorder %s36, 1
        %s784 = scalar_select %p783, %s36, 1
        %s785 = smul.addr %s784, 2
        %s786 = smul.addr %s785, 4
        %s787 = scalar_lea.vmem %s7, %s786
        %p788 = scmp.lt.s32.totalorder %s36, 1
        %s789 = scalar_select %p788, %s36, 1
        %s790 = smul.addr %s789, 2
        %s791 = smul.addr %s790, 8
        %s792 = scalar_lea.vmem %s8, %s791
        %p793 = scmp.lt.s32.totalorder %s36, 1
        %s794 = scalar_select %p793, %s36, 1
        %s795 = scalar_lea.vmem %s9, %s794
        %p796 = scmp.lt.s32.totalorder %s36, 1
        %s797 = scalar_select %p796, %s36, 1
        %s798 = scalar_lea.vmem %s10, %s797
        %p799 = scmp.lt.s32.totalorder %s36, 1
        %s800 = scalar_select %p799, %s36, 1
        %s801 = smul.addr %s800, 4
        %s802 = smul.addr %s801, 4
        %s803 = scalar_lea.vmem %s11, %s802
        %p804 = scmp.lt.s32.totalorder %s36, 1
        %s805 = scalar_select %p804, %s36, 1
        %s806 = scalar_lea.vmem %s12, %s805
        %p807 = scmp.lt.s32.totalorder %s36, 1
        %s808 = scalar_select %p807, %s36, 1
        %s809 = smul.addr %s808, 8
        %s810 = smul.addr %s809, 4
        %s811 = scalar_lea.vmem %s13, %s810
        %p812 = scmp.lt.s32.totalorder %s36, 1
        %s813 = scalar_select %p812, %s36, 1
        %s814 = scalar_lea.vmem %s14, %s813
        %p816 = scmp.eq.s32.totalorder %s36, 0
        // Predicated region
        $region97: #{mlp_mixer_forward.1} parent=95 // pred_check
          %p817 = pneg %p816
        $region98: #{mlp_mixer_forward.1} parent=95 // pred_check_branch
          %819 = sbr.rel (%p817) target = $region100
        $region99: #{mlp_mixer_forward.1} parent=95 // pred_region
          %v820 = vld [vmem:[%s765] sm:$0xf]
          %v821 = vld [vmem:[%s765 + $0x4] sm:$0xf]
          %s822 = scalar_lea.vmem %s765, 8
          %v823 = vld [vmem:[%s822] sm:$0xf]
          %v824 = vld [vmem:[%s822 + $0x4] sm:$0xf]
          %v827 = vunpack.c.l.b16 %v820
          %v828 = vunpack.c.l.b16 %v821
          %v829 = vpack.c.b16 %v828, %v827
          %v832 = vunpack.c.l.b16 %v823
          %v833 = vunpack.c.l.b16 %v824
          %v834 = vpack.c.b16 %v833, %v832
          %v835 = vld [vmem:[%s1] sm:$0xf]
          %v836 = vld [vmem:[%s1 + $0x4] sm:$0xf]
          %v837 = vld [vmem:[%s1 + $0x8] sm:$0xf]
          %v838 = vld [vmem:[%s1 + $0xc] sm:$0xf]
          %v839 = vld [vmem:[%s1 + $0x10] sm:$0xf]
          %v840 = vld [vmem:[%s1 + $0x14] sm:$0xf]
          %v841 = vld [vmem:[%s1 + $0x18] sm:$0xf]
          %v842 = vld [vmem:[%s1 + $0x1c] sm:$0xf]
          %v843 = vld [vmem:[%s2] sm:$0x1]
          %v845 = vperm.slane %v843, 0
          %v855 = vunpack.c.l.b16 %v835
          %v856 = vunpack.c.l.b16 %v836
          %v857 = vunpack.c.l.b16 %v837
          %v858 = vunpack.c.l.b16 %v838
          %v859 = vunpack.c.l.b16 %v839
          %v860 = vunpack.c.l.b16 %v840
          %v861 = vunpack.c.l.b16 %v841
          %v862 = vunpack.c.l.b16 %v842
          %v863 = vpack.c.b16 %v856, %v855
          %v864 = vpack.c.b16 %v858, %v857
          %v865 = vpack.c.b16 %v860, %v859
          %v866 = vpack.c.b16 %v862, %v861
          %vm871 = vcmask 523264
          %v873 = vsel %vm871, %v829, 0
          %v876 = vsel %vm871, %v834, 0
          %878 = vmatpush.bf16.msra.mxu0 0
          %879 = vmatpush.bf16.msra.mxu0 0
          %880 = vmatpush.bf16.msra.mxu0 0
          %881 = vmatpush.bf16.msra.mxu0 0
          %882 = vmatpush.bf16.msra.mxu0 %v866
          %883 = vmatpush.bf16.msra.mxu0 %v865
          %884 = vmatpush.bf16.msra.mxu0 %v864
          %885 = vmatpush.bf16.msra.mxu0 %v863
          %886 = vmatmul.bf16.gmra.mxu0 %v873
          %v887 = vpop.f32.mrf.mxu0
          %v888 = vadd.f32 %v845, %v887
          %v889 = vpop.f32.mrf.mxu0
          %v890 = vadd.f32 %v845, %v889
          %891 = vmatmul.bf16.gmra.mxu0 %v876
          %v892 = vpop.f32.mrf.mxu0
          %v893 = vadd.f32 %v845, %v892
          %v894 = vpop.f32.mrf.mxu0
          %v895 = vadd.f32 %v845, %v894
          %896 = vdwg.mxu0
          %vm897 = vcmask 261120
          %898 = vst.msk [vmem:[#allocation2] sm:$0xff] %vm897, %v888
          %899 = vst.msk [vmem:[#allocation2 + $0x8] sm:$0xff] %vm897, %v890
          %900 = vst.msk [vmem:[#allocation2 + $0x10] sm:$0xff] %vm897, %v893
          %901 = vst.msk [vmem:[#allocation2 + $0x18] sm:$0xff] %vm897, %v895
        $region100: #{mlp_mixer_forward.1} parent=95 // pred_fallthru
          _
        %v902 = vld [vmem:[#allocation2] sm:$0xff]
        %v903 = vld [vmem:[#allocation2 + $0x8] sm:$0xff]
        %v904 = vld [vmem:[#allocation2 + $0x10] sm:$0xff]
        %v905 = vld [vmem:[#allocation2 + $0x18] sm:$0xff]
        %v906 = vld [vmem:[%s769] sm:$0x1]
        %v907 = vld [vmem:[%s772] sm:$0x1]
        %vm908 = vcmask 261120
        %v909 = vsel %vm908, %v902, 0.0
        %910 = vadd.xlane.f32.xlu0 %v909
        %v911 = vpop.xlane.xlu0 %910
        %v912 = vsel %vm908, %v903, 0.0
        %913 = vadd.xlane.f32.xlu0 %v912
        %v914 = vpop.xlane.xlu0 %913
        %v915 = vsel %vm908, %v904, 0.0
        %916 = vadd.xlane.f32.xlu0 %v915
        %v917 = vpop.xlane.xlu0 %916
        %v918 = vsel %vm908, %v905, 0.0
        %919 = vadd.xlane.f32.xlu0 %v918
        %v920 = vpop.xlane.xlu0 %919
        %v921 = vrcp.pop 32.0
        %v922 = vmul.f32 32.0, %v921
        %v923 = vsub.f32 1.0, %v922
        %v924 = vmul.f32 %v921, %v923
        %v925 = vadd.f32 %v921, %v924
        %vm926 = vweird.f32 %v921
        %v927 = vsel %vm926, %v921, %v925
        %v928 = vmul.f32 %v911, %v927
        %v929 = vmul.f32 %v914, %v927
        %v930 = vmul.f32 %v917, %v927
        %v931 = vmul.f32 %v920, %v927
        %v932 = vmul.f32 %v902, %v902
        %v933 = vmul.f32 %v903, %v903
        %v934 = vmul.f32 %v904, %v904
        %v935 = vmul.f32 %v905, %v905
        %v936 = vsel %vm908, %v932, 0.0
        %937 = vadd.xlane.f32.xlu0 %v936
        %v938 = vpop.xlane.xlu0 %937
        %v939 = vsel %vm908, %v933, 0.0
        %940 = vadd.xlane.f32.xlu0 %v939
        %v941 = vpop.xlane.xlu0 %940
        %v942 = vsel %vm908, %v934, 0.0
        %943 = vadd.xlane.f32.xlu0 %v942
        %v944 = vpop.xlane.xlu0 %943
        %v945 = vsel %vm908, %v935, 0.0
        %946 = vadd.xlane.f32.xlu0 %v945
        %v947 = vpop.xlane.xlu0 %946
        %v948 = vmul.f32 %v938, %v927
        %v949 = vmul.f32 %v941, %v927
        %v950 = vmul.f32 %v944, %v927
        %v951 = vmul.f32 %v947, %v927
        %v952 = vmul.f32 %v928, %v928
        %v953 = vmul.f32 %v929, %v929
        %v954 = vmul.f32 %v930, %v930
        %v955 = vmul.f32 %v931, %v931
        %v956 = vsub.f32 %v948, %v952
        %v957 = vsub.f32 %v949, %v953
        %v958 = vsub.f32 %v950, %v954
        %v959 = vsub.f32 %v951, %v955
        %v960 = vsub.f32 %v902, %v928
        %v961 = vsub.f32 %v903, %v929
        %v962 = vsub.f32 %v904, %v930
        %v963 = vsub.f32 %v905, %v931
        %v964 = vadd.f32 %v956, 1e-05
        %v965 = vadd.f32 %v957, 1e-05
        %v966 = vadd.f32 %v958, 1e-05
        %v967 = vadd.f32 %v959, 1e-05
        %v968 = vrsqrt.pop %v964
        %v969 = vmul.f32 %v968, %v964
        %v970 = vmul.f32 %v969, %v968
        %v971 = vmul.f32 0.5, %v970
        %v972 = vsub.f32 1.5, %v971
        %v973 = vmul.f32 %v968, %v972
        %vm974 = vweird.f32 %v964
        %vm975 = vweird.f32 %v968
        %vm976 = vmor %vm974, %vm975
        %v977 = vsel %vm976, %v968, %v973
        %v978 = vrsqrt.pop %v965
        %v979 = vmul.f32 %v978, %v965
        %v980 = vmul.f32 %v979, %v978
        %v981 = vmul.f32 0.5, %v980
        %v982 = vsub.f32 1.5, %v981
        %v983 = vmul.f32 %v978, %v982
        %vm984 = vweird.f32 %v965
        %vm985 = vweird.f32 %v978
        %vm986 = vmor %vm984, %vm985
        %v987 = vsel %vm986, %v978, %v983
        %v988 = vrsqrt.pop %v966
        %v989 = vmul.f32 %v988, %v966
        %v990 = vmul.f32 %v989, %v988
        %v991 = vmul.f32 0.5, %v990
        %v992 = vsub.f32 1.5, %v991
        %v993 = vmul.f32 %v988, %v992
        %vm994 = vweird.f32 %v966
        %vm995 = vweird.f32 %v988
        %vm996 = vmor %vm994, %vm995
        %v997 = vsel %vm996, %v988, %v993
        %v998 = vrsqrt.pop %v967
        %v999 = vmul.f32 %v998, %v967
        %v1000 = vmul.f32 %v999, %v998
        %v1001 = vmul.f32 0.5, %v1000
        %v1002 = vsub.f32 1.5, %v1001
        %v1003 = vmul.f32 %v998, %v1002
        %vm1004 = vweird.f32 %v967
        %vm1005 = vweird.f32 %v998
        %vm1006 = vmor %vm1004, %vm1005
        %v1007 = vsel %vm1006, %v998, %v1003
        %v1008 = vmul.f32 %v960, %v977
        %v1009 = vmul.f32 %v961, %v987
        %v1010 = vmul.f32 %v962, %v997
        %v1011 = vmul.f32 %v963, %v1007
        %v1013 = vperm.slane %v906, 0
        %v1015 = vmul.f32 %v1008, %v1013
        %v1016 = vmul.f32 %v1009, %v1013
        %v1017 = vmul.f32 %v1010, %v1013
        %v1018 = vmul.f32 %v1011, %v1013
        %v1020 = vperm.slane %v907, 0
        %v1022 = vadd.f32 %v1015, %v1020
        %v1023 = vadd.f32 %v1016, %v1020
        %v1024 = vadd.f32 %v1017, %v1020
        %v1025 = vadd.f32 %v1018, %v1020
        %1028 = vrot.lane.b32.xlu0 %v1024, 32
        %v1029 = vpop.permute.xlu0 %1028
        %1030 = vrot.lane.b32.xlu0 %v1025, 32
        %v1031 = vpop.permute.xlu0 %1030
        %v1034 = vsel %vm908, %v1022, %v1029
        %v1035 = vsel %vm908, %v1023, %v1031
        %v1036 = vpack.c.bf16 %v1035, %v1034
        %v1037 = vld [vmem:[%s777] sm:$0xf]
        %v1038 = vld [vmem:[%s777 + $0x4] sm:$0xf]
        %v1039 = vld [vmem:[%s782] sm:$0xff]
        %v1040 = vld [vmem:[%s782 + $0x8] sm:$0xff]
        %1042 = vset.pattern.permute.xlu0 0
        %1043 = vperm.xlu0 %1042, %v1039
        %v1044 = vpop.permute.xlu0 %1043
        %1047 = vset.pattern.permute.xlu0 0
        %1048 = vperm.xlu0 %1047, %v1040
        %v1049 = vpop.permute.xlu0 %1048
        %v1053 = vunpack.c.l.b16 %v1037
        %v1054 = vunpack.c.l.b16 %v1038
        %v1055 = vpack.c.b16 %v1054, %v1053
        %vm1056 = vcmask 130048
        %v1058 = vsel %vm1056, %v1055, 0
        %1060 = vmatpush.bf16.msra.mxu0 0
        %1061 = vmatpush.bf16.msra.mxu0 0
        %1062 = vmatpush.bf16.msra.mxu0 0
        %1063 = vmatpush.bf16.msra.mxu0 0
        %1064 = vmatpush.bf16.msra.mxu0 0
        %1065 = vmatpush.bf16.msra.mxu0 0
        %1066 = vmatpush.bf16.msra.mxu0 0
        %1067 = vmatpush.bf16.msra.mxu0 %v1036
        %1068 = vmatmul.bf16.gmra.mxu0 %v1058
        %v1069 = vpop.f32.mrf.mxu0
        %v1070 = vadd.f32 %v1044, %v1069
        %v1071 = vpop.f32.mrf.mxu0
        %v1072 = vadd.f32 %v1049, %v1071
        %1073 = vdwg.mxu0
        %v1074 = vmul.f32 %v1070, %v1070
        %v1075 = vmul.f32 %v1072, %v1072
        %v1076 = vmul.f32 %v1074, %v1070
        %v1077 = vmul.f32 %v1075, %v1072
        %v1078 = vmul.f32 %v1076, 0.044715
        %v1079 = vmul.f32 %v1077, 0.044715
        %v1080 = vadd.f32 %v1070, %v1078
        %v1081 = vadd.f32 %v1072, %v1079
        %v1082 = vmul.f32 %v1080, 0.7978846
        %v1083 = vmul.f32 %v1081, 0.7978846
        %v1084 = vmul.f32 %v1070, 0.5
        %v1085 = vmul.f32 %v1072, 0.5
        %v1086 = vtanh.pop %v1082
        %v1087 = vtanh.pop %v1083
        %v1088 = vadd.f32 %v1086, 1.0
        %v1089 = vadd.f32 %v1087, 1.0
        %v1090 = vmul.f32 %v1084, %v1088
        %v1091 = vmul.f32 %v1085, %v1089
        %v1092 = vpack.c.bf16 %v1091, %v1090
        %v1093 = vld [vmem:[%s787] sm:$0xf]
        %v1094 = vld [vmem:[%s787 + $0x4] sm:$0xf]
        %v1095 = vld [vmem:[%s792] sm:$0xff]
        %v1096 = vld [vmem:[%s792 + $0x8] sm:$0xff]
        %1098 = vset.pattern.permute.xlu0 0
        %1099 = vperm.xlu0 %1098, %v1095
        %v1100 = vpop.permute.xlu0 %1099
        %1103 = vset.pattern.permute.xlu0 0
        %1104 = vperm.xlu0 %1103, %v1096
        %v1105 = vpop.permute.xlu0 %1104
        %v1109 = vunpack.c.l.b16 %v1093
        %v1110 = vunpack.c.l.b16 %v1094
        %v1111 = vpack.c.b16 %v1110, %v1109
        %v1113 = vsel %vm1056, %v1111, 0
        %1115 = vmatpush.bf16.msra.mxu0 0
        %1116 = vmatpush.bf16.msra.mxu0 0
        %1117 = vmatpush.bf16.msra.mxu0 0
        %1118 = vmatpush.bf16.msra.mxu0 0
        %1119 = vmatpush.bf16.msra.mxu0 0
        %1120 = vmatpush.bf16.msra.mxu0 0
        %1121 = vmatpush.bf16.msra.mxu0 0
        %1122 = vmatpush.bf16.msra.mxu0 %v1092
        %1123 = vmatmul.bf16.gmra.mxu0 %v1113
        %v1124 = vpop.f32.mrf.mxu0
        %v1125 = vadd.f32 %v1100, %v1124
        %v1126 = vpop.f32.mrf.mxu0
        %v1127 = vadd.f32 %v1105, %v1126
        %1128 = vdwg.mxu0
        %1131 = vrot.lane.b32.xlu0 %v1125, 96
        %v1132 = vpop.permute.xlu0 %1131
        %1133 = vrot.lane.b32.xlu0 %v1127, 96
        %v1134 = vpop.permute.xlu0 %1133
        %v1137 = vadd.f32 %v1022, %v1125
        %v1138 = vadd.f32 %v1023, %v1127
        %v1139 = vadd.f32 %v1024, %v1132
        %v1140 = vadd.f32 %v1025, %v1134
        %v1141 = vld [vmem:[%s795] sm:$0x1]
        %v1142 = vld [vmem:[%s798] sm:$0x1]
        %v1143 = vsel %vm908, %v1137, 0.0
        %1144 = vadd.xlane.f32.xlu0 %v1143
        %v1145 = vpop.xlane.xlu0 %1144
        %v1146 = vsel %vm908, %v1138, 0.0
        %1147 = vadd.xlane.f32.xlu0 %v1146
        %v1148 = vpop.xlane.xlu0 %1147
        %v1149 = vsel %vm908, %v1139, 0.0
        %1150 = vadd.xlane.f32.xlu0 %v1149
        %v1151 = vpop.xlane.xlu0 %1150
        %v1152 = vsel %vm908, %v1140, 0.0
        %1153 = vadd.xlane.f32.xlu0 %v1152
        %v1154 = vpop.xlane.xlu0 %1153
        %v1155 = vmul.f32 %v1145, %v927
        %v1156 = vmul.f32 %v1148, %v927
        %v1157 = vmul.f32 %v1151, %v927
        %v1158 = vmul.f32 %v1154, %v927
        %v1159 = vmul.f32 %v1137, %v1137
        %v1160 = vmul.f32 %v1138, %v1138
        %v1161 = vmul.f32 %v1139, %v1139
        %v1162 = vmul.f32 %v1140, %v1140
        %v1163 = vsel %vm908, %v1159, 0.0
        %1164 = vadd.xlane.f32.xlu0 %v1163
        %v1165 = vpop.xlane.xlu0 %1164
        %v1166 = vsel %vm908, %v1160, 0.0
        %1167 = vadd.xlane.f32.xlu0 %v1166
        %v1168 = vpop.xlane.xlu0 %1167
        %v1169 = vsel %vm908, %v1161, 0.0
        %1170 = vadd.xlane.f32.xlu0 %v1169
        %v1171 = vpop.xlane.xlu0 %1170
        %v1172 = vsel %vm908, %v1162, 0.0
        %1173 = vadd.xlane.f32.xlu0 %v1172
        %v1174 = vpop.xlane.xlu0 %1173
        %v1175 = vmul.f32 %v1165, %v927
        %v1176 = vmul.f32 %v1168, %v927
        %v1177 = vmul.f32 %v1171, %v927
        %v1178 = vmul.f32 %v1174, %v927
        %v1179 = vmul.f32 %v1155, %v1155
        %v1180 = vmul.f32 %v1156, %v1156
        %v1181 = vmul.f32 %v1157, %v1157
        %v1182 = vmul.f32 %v1158, %v1158
        %v1183 = vsub.f32 %v1175, %v1179
        %v1184 = vsub.f32 %v1176, %v1180
        %v1185 = vsub.f32 %v1177, %v1181
        %v1186 = vsub.f32 %v1178, %v1182
        %v1187 = vsub.f32 %v1137, %v1155
        %v1188 = vsub.f32 %v1138, %v1156
        %v1189 = vsub.f32 %v1139, %v1157
        %v1190 = vsub.f32 %v1140, %v1158
        %v1191 = vadd.f32 %v1183, 1e-05
        %v1192 = vadd.f32 %v1184, 1e-05
        %v1193 = vadd.f32 %v1185, 1e-05
        %v1194 = vadd.f32 %v1186, 1e-05
        %v1195 = vrsqrt.pop %v1191
        %v1196 = vmul.f32 %v1195, %v1191
        %v1197 = vmul.f32 %v1196, %v1195
        %v1198 = vmul.f32 0.5, %v1197
        %v1199 = vsub.f32 1.5, %v1198
        %v1200 = vmul.f32 %v1195, %v1199
        %vm1201 = vweird.f32 %v1191
        %vm1202 = vweird.f32 %v1195
        %vm1203 = vmor %vm1201, %vm1202
        %v1204 = vsel %vm1203, %v1195, %v1200
        %v1205 = vrsqrt.pop %v1192
        %v1206 = vmul.f32 %v1205, %v1192
        %v1207 = vmul.f32 %v1206, %v1205
        %v1208 = vmul.f32 0.5, %v1207
        %v1209 = vsub.f32 1.5, %v1208
        %v1210 = vmul.f32 %v1205, %v1209
        %vm1211 = vweird.f32 %v1192
        %vm1212 = vweird.f32 %v1205
        %vm1213 = vmor %vm1211, %vm1212
        %v1214 = vsel %vm1213, %v1205, %v1210
        %v1215 = vrsqrt.pop %v1193
        %v1216 = vmul.f32 %v1215, %v1193
        %v1217 = vmul.f32 %v1216, %v1215
        %v1218 = vmul.f32 0.5, %v1217
        %v1219 = vsub.f32 1.5, %v1218
        %v1220 = vmul.f32 %v1215, %v1219
        %vm1221 = vweird.f32 %v1193
        %vm1222 = vweird.f32 %v1215
        %vm1223 = vmor %vm1221, %vm1222
        %v1224 = vsel %vm1223, %v1215, %v1220
        %v1225 = vrsqrt.pop %v1194
        %v1226 = vmul.f32 %v1225, %v1194
        %v1227 = vmul.f32 %v1226, %v1225
        %v1228 = vmul.f32 0.5, %v1227
        %v1229 = vsub.f32 1.5, %v1228
        %v1230 = vmul.f32 %v1225, %v1229
        %vm1231 = vweird.f32 %v1194
        %vm1232 = vweird.f32 %v1225
        %vm1233 = vmor %vm1231, %vm1232
        %v1234 = vsel %vm1233, %v1225, %v1230
        %v1235 = vmul.f32 %v1187, %v1204
        %v1236 = vmul.f32 %v1188, %v1214
        %v1237 = vmul.f32 %v1189, %v1224
        %v1238 = vmul.f32 %v1190, %v1234
        %v1240 = vperm.slane %v1141, 0
        %v1242 = vmul.f32 %v1235, %v1240
        %v1243 = vmul.f32 %v1236, %v1240
        %v1244 = vmul.f32 %v1237, %v1240
        %v1245 = vmul.f32 %v1238, %v1240
        %v1247 = vperm.slane %v1142, 0
        %v1249 = vadd.f32 %v1242, %v1247
        %v1250 = vadd.f32 %v1243, %v1247
        %v1251 = vadd.f32 %v1244, %v1247
        %v1252 = vadd.f32 %v1245, %v1247
        %v1253 = vpack.c.bf16 %v1250, %v1249
        %v1254 = vpack.c.bf16 %v1252, %v1251
        %v1255 = vld [vmem:[%s803] sm:$0xf]
        %v1256 = vld [vmem:[%s803 + $0x4] sm:$0xf]
        %v1257 = vld [vmem:[%s803 + $0x8] sm:$0xf]
        %v1258 = vld [vmem:[%s803 + $0xc] sm:$0xf]
        %v1259 = vld [vmem:[%s806] sm:$0x1]
        %v1261 = vperm.slane %v1259, 0
        %v1267 = vunpack.c.l.b16 %v1255
        %v1268 = vunpack.c.l.b16 %v1256
        %v1269 = vunpack.c.l.b16 %v1257
        %v1270 = vunpack.c.l.b16 %v1258
        %v1271 = vpack.c.b16 %v1268, %v1267
        %v1272 = vpack.c.b16 %v1270, %v1269
        %v1276 = vsel %vm908, %v1253, 0
        %v1279 = vsel %vm908, %v1254, 0
        %1281 = vmatpush.bf16.msra.mxu0 0
        %1282 = vmatpush.bf16.msra.mxu0 0
        %1283 = vmatpush.bf16.msra.mxu0 0
        %1284 = vmatpush.bf16.msra.mxu0 0
        %1285 = vmatpush.bf16.msra.mxu0 0
        %1286 = vmatpush.bf16.msra.mxu0 0
        %1287 = vmatpush.bf16.msra.mxu0 %v1272
        %1288 = vmatpush.bf16.msra.mxu0 %v1271
        %1289 = vmatmul.bf16.gmra.mxu0 %v1276
        %v1290 = vpop.f32.mrf.mxu0
        %v1291 = vadd.f32 %v1261, %v1290
        %v1292 = vpop.f32.mrf.mxu0
        %v1293 = vadd.f32 %v1261, %v1292
        %1294 = vmatmul.bf16.gmra.mxu0 %v1279
        %v1295 = vpop.f32.mrf.mxu0
        %v1296 = vadd.f32 %v1261, %v1295
        %v1297 = vpop.f32.mrf.mxu0
        %v1298 = vadd.f32 %v1261, %v1297
        %1299 = vdwg.mxu0
        %v1300 = vmul.f32 %v1291, %v1291
        %v1301 = vmul.f32 %v1293, %v1293
        %v1302 = vmul.f32 %v1296, %v1296
        %v1303 = vmul.f32 %v1298, %v1298
        %v1304 = vmul.f32 %v1300, %v1291
        %v1305 = vmul.f32 %v1301, %v1293
        %v1306 = vmul.f32 %v1302, %v1296
        %v1307 = vmul.f32 %v1303, %v1298
        %v1308 = vmul.f32 %v1304, 0.044715
        %v1309 = vmul.f32 %v1305, 0.044715
        %v1310 = vmul.f32 %v1306, 0.044715
        %v1311 = vmul.f32 %v1307, 0.044715
        %v1312 = vadd.f32 %v1291, %v1308
        %v1313 = vadd.f32 %v1293, %v1309
        %v1314 = vadd.f32 %v1296, %v1310
        %v1315 = vadd.f32 %v1298, %v1311
        %v1316 = vmul.f32 %v1312, 0.7978846
        %v1317 = vmul.f32 %v1313, 0.7978846
        %v1318 = vmul.f32 %v1314, 0.7978846
        %v1319 = vmul.f32 %v1315, 0.7978846
        %v1320 = vmul.f32 %v1291, 0.5
        %v1321 = vmul.f32 %v1293, 0.5
        %v1322 = vmul.f32 %v1296, 0.5
        %v1323 = vmul.f32 %v1298, 0.5
        %v1324 = vtanh.pop %v1316
        %v1325 = vtanh.pop %v1317
        %v1326 = vtanh.pop %v1318
        %v1327 = vtanh.pop %v1319
        %v1328 = vadd.f32 %v1324, 1.0
        %v1329 = vadd.f32 %v1325, 1.0
        %v1330 = vadd.f32 %v1326, 1.0
        %v1331 = vadd.f32 %v1327, 1.0
        %v1332 = vmul.f32 %v1320, %v1328
        %v1333 = vmul.f32 %v1321, %v1329
        %v1334 = vmul.f32 %v1322, %v1330
        %v1335 = vmul.f32 %v1323, %v1331
        %v1336 = vpack.c.bf16 %v1333, %v1332
        %v1337 = vpack.c.bf16 %v1335, %v1334
        %v1338 = vld [vmem:[%s811] sm:$0xf]
        %v1339 = vld [vmem:[%s811 + $0x4] sm:$0xf]
        %v1340 = vld [vmem:[%s811 + $0x8] sm:$0xf]
        %v1341 = vld [vmem:[%s811 + $0xc] sm:$0xf]
        %v1342 = vld [vmem:[%s811 + $0x10] sm:$0xf]
        %v1343 = vld [vmem:[%s811 + $0x14] sm:$0xf]
        %v1344 = vld [vmem:[%s811 + $0x18] sm:$0xf]
        %v1345 = vld [vmem:[%s811 + $0x1c] sm:$0xf]
        %v1346 = vld [vmem:[%s814] sm:$0x1]
        %v1348 = vperm.slane %v1346, 0
        %v1358 = vunpack.c.l.b16 %v1338
        %v1359 = vunpack.c.l.b16 %v1339
        %v1360 = vunpack.c.l.b16 %v1340
        %v1361 = vunpack.c.l.b16 %v1341
        %v1362 = vunpack.c.l.b16 %v1342
        %v1363 = vunpack.c.l.b16 %v1343
        %v1364 = vunpack.c.l.b16 %v1344
        %v1365 = vunpack.c.l.b16 %v1345
        %v1366 = vpack.c.b16 %v1359, %v1358
        %v1367 = vpack.c.b16 %v1361, %v1360
        %v1368 = vpack.c.b16 %v1363, %v1362
        %v1369 = vpack.c.b16 %v1365, %v1364
        %vm1374 = vcmask 523264
        %v1376 = vsel %vm1374, %v1336, 0
        %v1379 = vsel %vm1374, %v1337, 0
        %1381 = vmatpush.bf16.msra.mxu0 0
        %1382 = vmatpush.bf16.msra.mxu0 0
        %1383 = vmatpush.bf16.msra.mxu0 0
        %1384 = vmatpush.bf16.msra.mxu0 0
        %1385 = vmatpush.bf16.msra.mxu0 %v1369
        %1386 = vmatpush.bf16.msra.mxu0 %v1368
        %1387 = vmatpush.bf16.msra.mxu0 %v1367
        %1388 = vmatpush.bf16.msra.mxu0 %v1366
        %1389 = vmatmul.bf16.gmra.mxu0 %v1376
        %v1390 = vpop.f32.mrf.mxu0
        %v1391 = vadd.f32 %v1348, %v1390
        %v1392 = vpop.f32.mrf.mxu0
        %v1393 = vadd.f32 %v1348, %v1392
        %1394 = vmatmul.bf16.gmra.mxu0 %v1379
        %v1395 = vpop.f32.mrf.mxu0
        %v1396 = vadd.f32 %v1348, %v1395
        %v1397 = vpop.f32.mrf.mxu0
        %v1398 = vadd.f32 %v1348, %v1397
        %1399 = vdwg.mxu0
        %v1400 = vadd.f32 %v1137, %v1391
        %v1401 = vadd.f32 %v1138, %v1393
        %v1402 = vadd.f32 %v1139, %v1396
        %v1403 = vadd.f32 %v1140, %v1398
        %1404 = vst.msk [vmem:[#allocation2] sm:$0xff] %vm908, %v1400
        %1405 = vst.msk [vmem:[#allocation2 + $0x8] sm:$0xff] %vm908, %v1401
        %1406 = vst.msk [vmem:[#allocation2 + $0x10] sm:$0xff] %vm908, %v1402
        %1407 = vst.msk [vmem:[#allocation2 + $0x18] sm:$0xff] %vm908, %v1403
        %p1408 = scmp.eq.s32.totalorder %s36, 1
        // Predicated region
        $region101: #{mlp_mixer_forward.1} parent=95 // pred_check
          %p1409 = pneg %p1408
        $region102: #{mlp_mixer_forward.1} parent=95 // pred_check_branch
          %1411 = sbr.rel (%p1409) target = $region104
        $region103: #{mlp_mixer_forward.1} parent=95 // pred_region
          %v1412 = vld [vmem:[%s15] sm:$0x1]
          %v1413 = vld [vmem:[%s16] sm:$0x1]
          %v1414 = vsel %vm908, %v1400, 0.0
          %1415 = vadd.xlane.f32.xlu0 %v1414
          %v1416 = vpop.xlane.xlu0 %1415
          %v1417 = vsel %vm908, %v1401, 0.0
          %1418 = vadd.xlane.f32.xlu0 %v1417
          %v1419 = vpop.xlane.xlu0 %1418
          %v1420 = vsel %vm908, %v1402, 0.0
          %1421 = vadd.xlane.f32.xlu0 %v1420
          %v1422 = vpop.xlane.xlu0 %1421
          %v1423 = vsel %vm908, %v1403, 0.0
          %1424 = vadd.xlane.f32.xlu0 %v1423
          %v1425 = vpop.xlane.xlu0 %1424
          %v1426 = vmul.f32 %v1416, %v927
          %v1427 = vmul.f32 %v1419, %v927
          %v1428 = vmul.f32 %v1422, %v927
          %v1429 = vmul.f32 %v1425, %v927
          %v1430 = vmul.f32 %v1400, %v1400
          %v1431 = vmul.f32 %v1401, %v1401
          %v1432 = vmul.f32 %v1402, %v1402
          %v1433 = vmul.f32 %v1403, %v1403
          %v1434 = vsel %vm908, %v1430, 0.0
          %1435 = vadd.xlane.f32.xlu0 %v1434
          %v1436 = vpop.xlane.xlu0 %1435
          %v1437 = vsel %vm908, %v1431, 0.0
          %1438 = vadd.xlane.f32.xlu0 %v1437
          %v1439 = vpop.xlane.xlu0 %1438
          %v1440 = vsel %vm908, %v1432, 0.0
          %1441 = vadd.xlane.f32.xlu0 %v1440
          %v1442 = vpop.xlane.xlu0 %1441
          %v1443 = vsel %vm908, %v1433, 0.0
          %1444 = vadd.xlane.f32.xlu0 %v1443
          %v1445 = vpop.xlane.xlu0 %1444
          %v1446 = vmul.f32 %v1436, %v927
          %v1447 = vmul.f32 %v1439, %v927
          %v1448 = vmul.f32 %v1442, %v927
          %v1449 = vmul.f32 %v1445, %v927
          %v1450 = vmul.f32 %v1426, %v1426
          %v1451 = vmul.f32 %v1427, %v1427
          %v1452 = vmul.f32 %v1428, %v1428
          %v1453 = vmul.f32 %v1429, %v1429
          %v1454 = vsub.f32 %v1446, %v1450
          %v1455 = vsub.f32 %v1447, %v1451
          %v1456 = vsub.f32 %v1448, %v1452
          %v1457 = vsub.f32 %v1449, %v1453
          %v1458 = vsub.f32 %v1400, %v1426
          %v1459 = vsub.f32 %v1401, %v1427
          %v1460 = vsub.f32 %v1402, %v1428
          %v1461 = vsub.f32 %v1403, %v1429
          %v1462 = vadd.f32 %v1454, 1e-05
          %v1463 = vadd.f32 %v1455, 1e-05
          %v1464 = vadd.f32 %v1456, 1e-05
          %v1465 = vadd.f32 %v1457, 1e-05
          %v1466 = vrsqrt.pop %v1462
          %v1467 = vmul.f32 %v1466, %v1462
          %v1468 = vmul.f32 %v1467, %v1466
          %v1469 = vmul.f32 0.5, %v1468
          %v1470 = vsub.f32 1.5, %v1469
          %v1471 = vmul.f32 %v1466, %v1470
          %vm1472 = vweird.f32 %v1462
          %vm1473 = vweird.f32 %v1466
          %vm1474 = vmor %vm1472, %vm1473
          %v1475 = vsel %vm1474, %v1466, %v1471
          %v1476 = vrsqrt.pop %v1463
          %v1477 = vmul.f32 %v1476, %v1463
          %v1478 = vmul.f32 %v1477, %v1476
          %v1479 = vmul.f32 0.5, %v1478
          %v1480 = vsub.f32 1.5, %v1479
          %v1481 = vmul.f32 %v1476, %v1480
          %vm1482 = vweird.f32 %v1463
          %vm1483 = vweird.f32 %v1476
          %vm1484 = vmor %vm1482, %vm1483
          %v1485 = vsel %vm1484, %v1476, %v1481
          %v1486 = vrsqrt.pop %v1464
          %v1487 = vmul.f32 %v1486, %v1464
          %v1488 = vmul.f32 %v1487, %v1486
          %v1489 = vmul.f32 0.5, %v1488
          %v1490 = vsub.f32 1.5, %v1489
          %v1491 = vmul.f32 %v1486, %v1490
          %vm1492 = vweird.f32 %v1464
          %vm1493 = vweird.f32 %v1486
          %vm1494 = vmor %vm1492, %vm1493
          %v1495 = vsel %vm1494, %v1486, %v1491
          %v1496 = vrsqrt.pop %v1465
          %v1497 = vmul.f32 %v1496, %v1465
          %v1498 = vmul.f32 %v1497, %v1496
          %v1499 = vmul.f32 0.5, %v1498
          %v1500 = vsub.f32 1.5, %v1499
          %v1501 = vmul.f32 %v1496, %v1500
          %vm1502 = vweird.f32 %v1465
          %vm1503 = vweird.f32 %v1496
          %vm1504 = vmor %vm1502, %vm1503
          %v1505 = vsel %vm1504, %v1496, %v1501
          %v1506 = vmul.f32 %v1458, %v1475
          %v1507 = vmul.f32 %v1459, %v1485
          %v1508 = vmul.f32 %v1460, %v1495
          %v1509 = vmul.f32 %v1461, %v1505
          %v1511 = vperm.slane %v1412, 0
          %v1513 = vmul.f32 %v1506, %v1511
          %v1514 = vmul.f32 %v1507, %v1511
          %v1515 = vmul.f32 %v1508, %v1511
          %v1516 = vmul.f32 %v1509, %v1511
          %v1518 = vperm.slane %v1413, 0
          %v1520 = vadd.f32 %v1513, %v1518
          %v1521 = vadd.f32 %v1514, %v1518
          %v1522 = vadd.f32 %v1515, %v1518
          %v1523 = vadd.f32 %v1516, %v1518
          %v1524 = vsel %vm908, %v1520, 0.0
          %v1525 = vsel %vm908, %v1521, 0.0
          %v1526 = vadd.f32 %v1524, %v1525
          %v1527 = vrot.slane %v1526, 4
          %v1528 = vadd.f32 %v1526, %v1527
          %v1529 = vrot.slane %v1528, 2
          %v1530 = vadd.f32 %v1528, %v1529
          %v1531 = vrot.slane %v1530, 1
          %v1532 = vadd.f32 %v1530, %v1531
          %v1533 = vrcp.pop 16.0
          %v1534 = vmul.f32 16.0, %v1533
          %v1535 = vsub.f32 1.0, %v1534
          %v1536 = vmul.f32 %v1533, %v1535
          %v1537 = vadd.f32 %v1533, %v1536
          %vm1538 = vweird.f32 %v1533
          %v1539 = vsel %vm1538, %v1533, %v1537
          %v1540 = vmul.f32 %v1532, %v1539
          %v1541 = vsel %vm908, %v1522, 0.0
          %v1542 = vsel %vm908, %v1523, 0.0
          %v1543 = vadd.f32 %v1541, %v1542
          %v1544 = vrot.slane %v1543, 4
          %v1545 = vadd.f32 %v1543, %v1544
          %v1546 = vrot.slane %v1545, 2
          %v1547 = vadd.f32 %v1545, %v1546
          %v1548 = vrot.slane %v1547, 1
          %v1549 = vadd.f32 %v1547, %v1548
          %v1550 = vmul.f32 %v1549, %v1539
          %vm1551 = vcmask 1040384
          %v1552 = vsel %vm1551, %v1540, %v1550
          %v1553 = vpack.c.bf16 %v1552, %v1552
          %v1554 = vld [vmem:[%s17] sm:$0xf]
          %v1555 = vld [vmem:[%s17 + $0x4] sm:$0xf]
          %v1556 = vld [vmem:[%s17 + $0x8] sm:$0xf]
          %v1557 = vld [vmem:[%s17 + $0xc] sm:$0xf]
          %v1558 = vld [vmem:[%s18] sm:$0x1]
          %v1560 = vperm.slane %v1558, 0
          %v1566 = vunpack.c.l.b16 %v1554
          %v1567 = vunpack.c.l.b16 %v1555
          %v1568 = vunpack.c.l.b16 %v1556
          %v1569 = vunpack.c.l.b16 %v1557
          %v1570 = vpack.c.b16 %v1567, %v1566
          %v1571 = vpack.c.b16 %v1569, %v1568
          %v1575 = vsel %vm908, %v1553, 0
          %1577 = vmatpush.bf16.msra.mxu0 0
          %1578 = vmatpush.bf16.msra.mxu0 0
          %1579 = vmatpush.bf16.msra.mxu0 0
          %1580 = vmatpush.bf16.msra.mxu0 0
          %1581 = vmatpush.bf16.msra.mxu0 0
          %1582 = vmatpush.bf16.msra.mxu0 0
          %1583 = vmatpush.bf16.msra.mxu0 %v1571
          %1584 = vmatpush.bf16.msra.mxu0 %v1570
          %1585 = vmatmul.bf16.gmra.mxu0 %v1575
          %v1586 = vpop.f32.mrf.mxu0
          %v1587 = vadd.f32 %v1560, %v1586
          %v1588 = vpop.f32.mrf.mxu0
          %1589 = vdwg.mxu0
          %1590 = vst [vmem:[#allocation3] sm:$0x3] %v1587
        $region104: #{mlp_mixer_forward.1} parent=95 // pred_fallthru
          _
        // Predicated region
        $region105: #{mlp_mixer_forward.1} parent=95 // pred_check
          %p1591 = pneg %p525
        $region106: #{mlp_mixer_forward.1} parent=95 // pred_check_branch
          %1593 = sbr.rel (%p1591) target = $region108
        $region107: #{mlp_mixer_forward.1} parent=95 // pred_region
          %1595 = vsyncadd [#allocation4], 0
          %s1596 = smul.addr %s35, 2
          %s1597 = scalar_lea.hbm %s19, %s1596
          %s1599 = sshll.u32 [#allocation3], 4
          %s1600 = int_to_ptr.vmem [resolvable:$true] %s1599
          %s1601 = sshll.u32 %s1597, 4
          %s1602 = int_to_ptr.hbm [resolvable:$true] %s1601
          %1604 = dma.vmem_to_hbm [thread:$0]  %s1600, 32, %s1602, [#allocation4]
        $region108: #{mlp_mixer_forward.1} parent=95 // pred_fallthru
          _
        // Predicated region
        $region109: #{mlp_mixer_forward.1} parent=95 // pred_check
          %p1605 = pneg %p525
        $region110: #{mlp_mixer_forward.1} parent=95 // pred_check_branch
          %1607 = sbr.rel (%p1605) target = $region112
        $region111: #{mlp_mixer_forward.1} parent=95 // pred_region
          %1609 = dma.done [#allocation4], 32
        $region112: #{mlp_mixer_forward.1} parent=95 // pred_fallthru
          _
      $region96: #{mlp_mixer_forward.1} parent=5 // pred_fallthru
        _
      %p1610 = scmp.le.s32.totalorder 2, %s26
      // Predicated region
      $region113: #{mlp_mixer_forward.1} parent=5 // pred_check
        %p1611 = pneg %p1610
      $region114: #{mlp_mixer_forward.1} parent=5 // pred_check_branch
        %1613 = sbr.rel (%p1611) target = $region116
      $region115: #{mlp_mixer_forward.1} parent=5 // pred_region
        %s1614 = ssub.s32 %s26, 2
      $region116: #{mlp_mixer_forward.1} parent=5 // pred_fallthru
        _
    $region6: #{mlp_mixer_forward.1} parent=1 // loop_footer
      %s30 = sadd.s32 1, %s26
    $region7: #{mlp_mixer_forward.1} parent=1 // loop_footer_branch
      %25 = sbr.rel target = $region3
    $region8: #{mlp_mixer_forward.1} parent=1 // loop_exit
      _
    %1615 = vsyncpa [#allocation4], 1
    %s1616 = scalar_lea.sflag [#allocation4], 1
    %1617 = vsyncpa %s1616, 1

</llo_original>
